<compile_context>
chip_gen: v7x
topology: tpu7x:2x2x1
jax: 0.10.0
libtpu: 0.0.40
codegen_flags: <defaults>
</compile_context>

<pallas_src>
import functools

import jax
import jax.numpy as jnp
from jax.experimental import pallas as pl
from jax.experimental.pallas import tpu as pltpu


# --------------------------------------------------------------------------
# Single fused Pallas kernel: whole forward pass, everything VMEM-resident.
# --------------------------------------------------------------------------
def _fused_forward_kernel(ids_ref, mask_ref, img_ref,
                          emb_ref, w_enc_ref, b_enc_ref,
                          w_ft_ref, b_ft_ref,
                          w_ib_ref, b_ib_ref,
                          w_fi_ref, b_fi_ref,
                          w_qkv_ref, b_qkv_ref,
                          w_o_ref, b_o_ref,
                          w_cls_ref, b_cls_ref,
                          o_ref, *, num_heads):
    f32 = jnp.float32
    bsz = ids_ref.shape[0]
    vocab = emb_ref.shape[0]
    n_img = img_ref.shape[0]
    hid = w_qkv_ref.shape[0]            # num_classes == title hidden (stand-in 768)
    hd = hid // num_heads

    # ---------------- title branch (stand-in DistilBERT), CLS row only -------
    ids_cls = ids_ref[:, 0:1]                                        # (B, 1) int32
    iota = jax.lax.broadcasted_iota(jnp.int32, (bsz, vocab), 1)
    onehot = (iota == ids_cls).astype(f32)                           # (B, V)
    emb_cls = jnp.dot(onehot, emb_ref[...], preferred_element_type=f32)   # (B, D)
    emb_cls = emb_cls * mask_ref[:, 0:1].astype(f32)
    hidden = jnp.tanh(jnp.dot(emb_cls, w_enc_ref[...],
                              preferred_element_type=f32) + b_enc_ref[...])
    # dropout is identity in eval mode
    title_output = jnp.dot(hidden, w_ft_ref[...],
                           preferred_element_type=f32) + b_ft_ref[...]    # (B, C)

    # ---------------- image branch (stand-in ResNet34 + fc_image), batched ---
    feat = jnp.dot(img_ref[...], w_ib_ref[...],
                   preferred_element_type=f32) + b_ib_ref[...]
    feat = jnp.maximum(feat, 0.0)
    image_output = jnp.dot(feat, w_fi_ref[...],
                           preferred_element_type=f32) + b_fi_ref[...]    # (N_img, C)

    # ---------------- multi-head cross attention -----------------------------
    # Q from image_output (Lq = N_img), K/V from title_output (Lk = B).
    # One fused QKV matmul on the row-concatenated inputs; 1/sqrt(hd) scale is
    # pre-folded into the Q projection weights/bias.
    qkv_in = jnp.concatenate([image_output, title_output], axis=0)        # (Lq+Lk, C)
    qkv = jnp.dot(qkv_in, w_qkv_ref[...],
                  preferred_element_type=f32) + b_qkv_ref[...]            # (Lq+Lk, 3C)
    q = qkv[:n_img, 0:hid]
    k = qkv[n_img:, hid:2 * hid]
    v = qkv[n_img:, 2 * hid:3 * hid]
    qh = jnp.transpose(q.reshape(n_img, num_heads, hd), (1, 0, 2))        # (H, Lq, hd)
    kh = jnp.transpose(k.reshape(bsz, num_heads, hd), (1, 0, 2))          # (H, Lk, hd)
    vh = jnp.transpose(v.reshape(bsz, num_heads, hd), (1, 0, 2))          # (H, Lk, hd)
    s = jnp.einsum('hqd,hkd->hqk', qh, kh, preferred_element_type=f32)    # (H, Lq, Lk)
    s = s - jnp.max(s, axis=-1, keepdims=True)
    p = jnp.exp(s)
    p = p * pl.reciprocal(jnp.sum(p, axis=-1, keepdims=True), approx=True)
    ctx = jnp.einsum('hqk,hkd->hqd', p, vh, preferred_element_type=f32)   # (H, Lq, hd)
    ctx = jnp.transpose(ctx, (1, 0, 2)).reshape(n_img, hid)               # (Lq, C)
    attn_out = jnp.dot(ctx, w_o_ref[...],
                       preferred_element_type=f32) + b_o_ref[...]         # (Lq, C)

    # ---------------- fusion + classifier + softmax --------------------------
    # torch.cat(attention_outs, dim=1) == attn_out since n_images == 1; the
    # reference torch.maximum((B,C), (1, n_img*C)) broadcast requires this.
    fusion = jnp.maximum(title_output, attn_out)                          # (B, C)
    logits = jnp.dot(fusion, w_cls_ref[...],
                     preferred_element_type=f32) + b_cls_ref[...]
    logits = logits - jnp.max(logits, axis=1, keepdims=True)
    e = jnp.exp(logits)
    probs = e * pl.reciprocal(jnp.sum(e, axis=1, keepdims=True), approx=True)
    o_ref[...] = probs.astype(o_ref.dtype)


# --------------------------------------------------------------------------
# Model: parameter setup + single pallas_call in __call__.
# --------------------------------------------------------------------------
class MultimodalModelPallas:
    """Pallas-TPU port of MultimodalModel.forward (single fused kernel)."""

    def __init__(self, num_classes, num_heads, title_hidden, vocab_size,
                 image_shape, img_feat_dim, key):
        assert num_classes == title_hidden          # classifier: Linear(768, num_classes)
        assert num_classes % num_heads == 0
        self.num_heads = num_heads
        self.num_classes = num_classes

        c_in, ih, iw = image_shape
        img_flat = c_in * ih * iw
        ks = jax.random.split(key, 18)
        init = lambda k, shape, s=0.05: (s * jax.random.normal(k, shape)).astype(jnp.float32)

        # stand-in DistilBERT: token embedding + tanh linear; pooled = CLS token.
        self.emb_table = init(ks[0], (vocab_size, title_hidden), 0.2)
        self.w_enc = init(ks[1], (title_hidden, title_hidden))
        self.b_enc = init(ks[2], (1, title_hidden))
        # fc_title: Linear(title_hidden -> num_classes)
        self.w_fc_title = init(ks[3], (title_hidden, num_classes))
        self.b_fc_title = init(ks[4], (1, num_classes))
        # stand-in ResNet34: flatten + relu linear -> img_feat_dim (stand-in for 1000)
        self.w_img_bb = init(ks[5], (img_flat, img_feat_dim))
        self.b_img_bb = init(ks[6], (1, img_feat_dim))
        # fc_image: Linear(img_feat_dim -> num_classes)
        self.w_fc_image = init(ks[7], (img_feat_dim, num_classes))
        self.b_fc_image = init(ks[8], (1, num_classes))
        # CrossAttention(hidden_size=num_classes, num_heads): fused QKV weight,
        # with the 1/sqrt(head_dim) scale folded into the Q projection.
        scale = 1.0 / ((num_classes // num_heads) ** 0.5)
        wq, bq = init(ks[9], (num_classes, num_classes)), init(ks[10], (1, num_classes))
        wk, bk = init(ks[11], (num_classes, num_classes)), init(ks[12], (1, num_classes))
        wv, bv = init(ks[13], (num_classes, num_classes)), init(ks[14], (1, num_classes))
        self.w_qkv = jnp.concatenate([wq * scale, wk, wv], axis=1)   # (C, 3C)
        self.b_qkv = jnp.concatenate([bq * scale, bk, bv], axis=1)   # (1, 3C)
        self.w_o = init(ks[15], (num_classes, num_classes))
        self.b_o = jnp.zeros((1, num_classes), jnp.float32)
        # classifier: Linear(title_hidden -> num_classes)
        self.w_cls = init(ks[16], (title_hidden, num_classes))
        self.b_cls = jnp.zeros((1, num_classes), jnp.float32)

    def __call__(self, title_input_ids, title_attention_mask, images):
        bsz = title_input_ids.shape[0]
        n_img = images.shape[0]
        # the reference torch.maximum((B,C), (1, n_img*C)) broadcast requires:
        assert n_img * self.num_classes == self.num_classes

        imgs_flat = images.reshape(n_img, -1)   # NCHW -> (N, C*H*W); contiguous, no copy
        vmem = lambda: pl.BlockSpec(memory_space=pltpu.MemorySpace.VMEM)
        return pl.pallas_call(
            functools.partial(_fused_forward_kernel, num_heads=self.num_heads),
            out_shape=jax.ShapeDtypeStruct((bsz, self.num_classes), jnp.float32),
            in_specs=[vmem() for _ in range(18)],
            out_specs=vmem(),
        )(title_input_ids, title_attention_mask, imgs_flat,
          self.emb_table, self.w_enc, self.b_enc,
          self.w_fc_title, self.b_fc_title,
          self.w_img_bb, self.b_img_bb,
          self.w_fc_image, self.b_fc_image,
          self.w_qkv, self.b_qkv, self.w_o, self.b_o,
          self.w_cls, self.b_cls)


# --------------------------------------------------------------------------
if __name__ == "__main__":
    B, S, VOCAB = 2, 8, 32
    D_TITLE = 128            # lane-dense stand-in for DistilBERT hidden 768
    NUM_CLASSES = 128        # must equal D_TITLE (classifier Linear(768, num_classes))
    NUM_HEADS = 2
    IMG_SHAPE = (4, 16, 16)  # (C, H, W) -> 1024 flattened features
    IMG_FEAT = 128           # lane-dense stand-in for ResNet34's 1000-dim output
    N_IMAGES = 1             # reference maximum-broadcast only typechecks for 1

    key = jax.random.PRNGKey(0)
    k_model, k_ids, k_img = jax.random.split(key, 3)

    model = MultimodalModelPallas(NUM_CLASSES, NUM_HEADS, D_TITLE, VOCAB,
                                  IMG_SHAPE, IMG_FEAT, k_model)

    title_ids = jax.random.randint(k_ids, (B, S), 0, VOCAB, dtype=jnp.int32)
    title_mask = jnp.ones((B, S), jnp.int32).at[:, 6:].set(0)
    images = jax.random.normal(k_img, (N_IMAGES,) + IMG_SHAPE, dtype=jnp.float32)

    probs = jax.block_until_ready(model(title_ids, title_mask, images))

    assert probs.shape == (B, NUM_CLASSES)
    assert bool(jnp.all(probs >= 0.0))
    row_sums = jnp.sum(probs, axis=1)
    # approx-reciprocal softmax: rows sum to 1 within EUP vrcp accuracy
    assert bool(jnp.all(jnp.abs(row_sums - 1.0) < 1e-2))
    print("KERNEL_OK")
</pallas_src>

<mosaic_0001>
module attributes {stable_mosaic.version = 11 : i64} {
  func.func @_fused_forward_kernel(%arg0: memref<2x8xi32, #tpu.memory_space<vmem>>, %arg1: memref<2x8xi32, #tpu.memory_space<vmem>>, %arg2: memref<1x1024xf32, #tpu.memory_space<vmem>>, %arg3: memref<32x128xf32, #tpu.memory_space<vmem>>, %arg4: memref<128x128xf32, #tpu.memory_space<vmem>>, %arg5: memref<1x128xf32, #tpu.memory_space<vmem>>, %arg6: memref<128x128xf32, #tpu.memory_space<vmem>>, %arg7: memref<1x128xf32, #tpu.memory_space<vmem>>, %arg8: memref<1024x128xf32, #tpu.memory_space<vmem>>, %arg9: memref<1x128xf32, #tpu.memory_space<vmem>>, %arg10: memref<128x128xf32, #tpu.memory_space<vmem>>, %arg11: memref<1x128xf32, #tpu.memory_space<vmem>>, %arg12: memref<128x384xf32, #tpu.memory_space<vmem>>, %arg13: memref<1x384xf32, #tpu.memory_space<vmem>>, %arg14: memref<128x128xf32, #tpu.memory_space<vmem>>, %arg15: memref<1x128xf32, #tpu.memory_space<vmem>>, %arg16: memref<128x128xf32, #tpu.memory_space<vmem>>, %arg17: memref<1x128xf32, #tpu.memory_space<vmem>>, %arg18: memref<2x128xf32, #tpu.memory_space<vmem>>) attributes {dimension_semantics = [], scalar_prefetch = 0 : i64, scratch_operands = 0 : i64, tpu.core_type = #tpu.core_type<tc>} {
    %c0 = arith.constant 0 : index
    %c0_0 = arith.constant 0 : index
    %0 = vector.load %arg0[%c0, %c0_0] : memref<2x8xi32, #tpu.memory_space<vmem>>, vector<2x1xi32>
    %1 = tpu.iota {dimensions = array<i32: 1>} : vector<2x32xi32>
    %2 = vector.broadcast %0 : vector<2x1xi32> to vector<2x32xi32>
    %3 = arith.cmpi eq, %1, %2 : vector<2x32xi32>
    %4 = arith.extui %3 : vector<2x32xi1> to vector<2x32xi32>
    %5 = arith.sitofp %4 : vector<2x32xi32> to vector<2x32xf32>
    %c0_1 = arith.constant 0 : index
    %c0_2 = arith.constant 0 : index
    %6 = vector.load %arg3[%c0_1, %c0_2] : memref<32x128xf32, #tpu.memory_space<vmem>>, vector<32x128xf32>
    %cst = arith.constant dense<0.000000e+00> : vector<2x128xf32>
    %7 = tpu.matmul %5, %6, %cst {dimension_numbers = #tpu.dot_dimension_numbers<[1], [0], [0], [1], [0, 0, 1, 1], [], []>} : vector<2x32xf32>, vector<32x128xf32>, vector<2x128xf32> -> vector<2x128xf32>
    %c0_3 = arith.constant 0 : index
    %c0_4 = arith.constant 0 : index
    %8 = vector.load %arg1[%c0_3, %c0_4] : memref<2x8xi32, #tpu.memory_space<vmem>>, vector<2x1xi32>
    %9 = arith.sitofp %8 : vector<2x1xi32> to vector<2x1xf32>
    %10 = vector.broadcast %9 : vector<2x1xf32> to vector<2x128xf32>
    %11 = arith.mulf %7, %10 : vector<2x128xf32>
    %c0_5 = arith.constant 0 : index
    %c0_6 = arith.constant 0 : index
    %12 = vector.load %arg4[%c0_5, %c0_6] : memref<128x128xf32, #tpu.memory_space<vmem>>, vector<128x128xf32>
    %cst_7 = arith.constant dense<0.000000e+00> : vector<2x128xf32>
    %13 = tpu.matmul %11, %12, %cst_7 {dimension_numbers = #tpu.dot_dimension_numbers<[1], [0], [0], [1], [0, 0, 1, 1], [], []>} : vector<2x128xf32>, vector<128x128xf32>, vector<2x128xf32> -> vector<2x128xf32>
    %c0_8 = arith.constant 0 : index
    %c0_9 = arith.constant 0 : index
    %14 = vector.load %arg5[%c0_8, %c0_9] : memref<1x128xf32, #tpu.memory_space<vmem>>, vector<1x128xf32>
    %15 = vector.broadcast %14 : vector<1x128xf32> to vector<2x128xf32>
    %16 = arith.addf %13, %15 : vector<2x128xf32>
    %17 = math.tanh %16 : vector<2x128xf32>
    %c0_10 = arith.constant 0 : index
    %c0_11 = arith.constant 0 : index
    %18 = vector.load %arg6[%c0_10, %c0_11] : memref<128x128xf32, #tpu.memory_space<vmem>>, vector<128x128xf32>
    %cst_12 = arith.constant dense<0.000000e+00> : vector<2x128xf32>
    %19 = tpu.matmul %17, %18, %cst_12 {dimension_numbers = #tpu.dot_dimension_numbers<[1], [0], [0], [1], [0, 0, 1, 1], [], []>} : vector<2x128xf32>, vector<128x128xf32>, vector<2x128xf32> -> vector<2x128xf32>
    %c0_13 = arith.constant 0 : index
    %c0_14 = arith.constant 0 : index
    %20 = vector.load %arg7[%c0_13, %c0_14] : memref<1x128xf32, #tpu.memory_space<vmem>>, vector<1x128xf32>
    %21 = vector.broadcast %20 : vector<1x128xf32> to vector<2x128xf32>
    %22 = arith.addf %19, %21 : vector<2x128xf32>
    %c0_15 = arith.constant 0 : index
    %c0_16 = arith.constant 0 : index
    %23 = vector.load %arg2[%c0_15, %c0_16] : memref<1x1024xf32, #tpu.memory_space<vmem>>, vector<1x1024xf32>
    %c0_17 = arith.constant 0 : index
    %c0_18 = arith.constant 0 : index
    %24 = vector.load %arg8[%c0_17, %c0_18] : memref<1024x128xf32, #tpu.memory_space<vmem>>, vector<1024x128xf32>
    %cst_19 = arith.constant dense<0.000000e+00> : vector<1x128xf32>
    %25 = tpu.matmul %23, %24, %cst_19 {dimension_numbers = #tpu.dot_dimension_numbers<[1], [0], [0], [1], [0, 0, 1, 1], [], []>} : vector<1x1024xf32>, vector<1024x128xf32>, vector<1x128xf32> -> vector<1x128xf32>
    %c0_20 = arith.constant 0 : index
    %c0_21 = arith.constant 0 : index
    %26 = vector.load %arg9[%c0_20, %c0_21] : memref<1x128xf32, #tpu.memory_space<vmem>>, vector<1x128xf32>
    %27 = arith.addf %25, %26 : vector<1x128xf32>
    %cst_22 = arith.constant 0.000000e+00 : f32
    %28 = vector.broadcast %cst_22 : f32 to vector<1x128xf32>
    %29 = arith.maximumf %27, %28 : vector<1x128xf32>
    %c0_23 = arith.constant 0 : index
    %c0_24 = arith.constant 0 : index
    %30 = vector.load %arg10[%c0_23, %c0_24] : memref<128x128xf32, #tpu.memory_space<vmem>>, vector<128x128xf32>
    %cst_25 = arith.constant dense<0.000000e+00> : vector<1x128xf32>
    %31 = tpu.matmul %29, %30, %cst_25 {dimension_numbers = #tpu.dot_dimension_numbers<[1], [0], [0], [1], [0, 0, 1, 1], [], []>} : vector<1x128xf32>, vector<128x128xf32>, vector<1x128xf32> -> vector<1x128xf32>
    %c0_26 = arith.constant 0 : index
    %c0_27 = arith.constant 0 : index
    %32 = vector.load %arg11[%c0_26, %c0_27] : memref<1x128xf32, #tpu.memory_space<vmem>>, vector<1x128xf32>
    %33 = arith.addf %31, %32 : vector<1x128xf32>
    %34 = tpu.concatenate %33, %22 in 0 : vector<1x128xf32>, vector<2x128xf32> -> vector<3x128xf32>
    %c0_28 = arith.constant 0 : index
    %c0_29 = arith.constant 0 : index
    %35 = vector.load %arg12[%c0_28, %c0_29] : memref<128x384xf32, #tpu.memory_space<vmem>>, vector<128x384xf32>
    %cst_30 = arith.constant dense<0.000000e+00> : vector<3x384xf32>
    %36 = tpu.matmul %34, %35, %cst_30 {dimension_numbers = #tpu.dot_dimension_numbers<[1], [0], [0], [1], [0, 0, 1, 1], [], []>} : vector<3x128xf32>, vector<128x384xf32>, vector<3x384xf32> -> vector<3x384xf32>
    %c0_31 = arith.constant 0 : index
    %c0_32 = arith.constant 0 : index
    %37 = vector.load %arg13[%c0_31, %c0_32] : memref<1x384xf32, #tpu.memory_space<vmem>>, vector<1x384xf32>
    %38 = vector.broadcast %37 : vector<1x384xf32> to vector<3x384xf32>
    %39 = arith.addf %36, %38 : vector<3x384xf32>
    %40 = vector.extract_strided_slice %39 {offsets = [0, 0], sizes = [1, 128], strides = [1, 1]} : vector<3x384xf32> to vector<1x128xf32>
    %41 = vector.extract_strided_slice %39 {offsets = [1, 128], sizes = [2, 128], strides = [1, 1]} : vector<3x384xf32> to vector<2x128xf32>
    %42 = vector.extract_strided_slice %39 {offsets = [1, 256], sizes = [2, 128], strides = [1, 1]} : vector<3x384xf32> to vector<2x128xf32>
    %43 = vector.shape_cast %40 : vector<1x128xf32> to vector<1x2x64xf32>
    %44 = tpu.transpose %43, [1, 0, 2] : vector<1x2x64xf32> -> vector<2x1x64xf32>
    %45 = vector.shape_cast %41 : vector<2x128xf32> to vector<2x2x64xf32>
    %46 = tpu.transpose %45, [1, 0, 2] : vector<2x2x64xf32> -> vector<2x2x64xf32>
    %47 = vector.shape_cast %42 : vector<2x128xf32> to vector<2x2x64xf32>
    %48 = tpu.transpose %47, [1, 0, 2] : vector<2x2x64xf32> -> vector<2x2x64xf32>
    "tpu.trace_start"() <{level = 10 : i32, message = "hqd,hkd->hqk"}> : () -> ()
    %cst_33 = arith.constant dense<0.000000e+00> : vector<2x1x2xf32>
    %49 = tpu.matmul %44, %46, %cst_33 {dimension_numbers = #tpu.dot_dimension_numbers<[2], [2], [1], [1], [0, 0, 0, 1, 1, 1], [0], [0]>} : vector<2x1x64xf32>, vector<2x2x64xf32>, vector<2x1x2xf32> -> vector<2x1x2xf32>
    "tpu.trace_stop"() : () -> ()
    %cst_34 = arith.constant dense<0xFF800000> : vector<2x1xf32>
    %50 = vector.multi_reduction <maximumf>, %49, %cst_34 [2] : vector<2x1x2xf32> to vector<2x1xf32>
    %51 = vector.shape_cast %50 : vector<2x1xf32> to vector<2x1x1xf32>
    %52 = vector.broadcast %51 : vector<2x1x1xf32> to vector<2x1x2xf32>
    %53 = arith.subf %49, %52 : vector<2x1x2xf32>
    %54 = math.exp %53 : vector<2x1x2xf32>
    %cst_35 = arith.constant dense<0.000000e+00> : vector<2x1xf32>
    %55 = vector.multi_reduction <add>, %54, %cst_35 [2] : vector<2x1x2xf32> to vector<2x1xf32>
    %56 = vector.shape_cast %55 : vector<2x1xf32> to vector<2x1x1xf32>
    %57 = tpu.reciprocal %56 {approx = true} : vector<2x1x1xf32> -> vector<2x1x1xf32>
    %58 = vector.broadcast %57 : vector<2x1x1xf32> to vector<2x1x2xf32>
    %59 = arith.mulf %54, %58 : vector<2x1x2xf32>
    "tpu.trace_start"() <{level = 10 : i32, message = "hqk,hkd->hqd"}> : () -> ()
    %cst_36 = arith.constant dense<0.000000e+00> : vector<2x1x64xf32>
    %60 = tpu.matmul %59, %48, %cst_36 {dimension_numbers = #tpu.dot_dimension_numbers<[2], [1], [1], [2], [0, 0, 0, 1, 1, 2], [0], [0]>} : vector<2x1x2xf32>, vector<2x2x64xf32>, vector<2x1x64xf32> -> vector<2x1x64xf32>
    "tpu.trace_stop"() : () -> ()
    %61 = tpu.transpose %60, [1, 0, 2] : vector<2x1x64xf32> -> vector<1x2x64xf32>
    %62 = vector.shape_cast %61 : vector<1x2x64xf32> to vector<1x128xf32>
    %c0_37 = arith.constant 0 : index
    %c0_38 = arith.constant 0 : index
    %63 = vector.load %arg14[%c0_37, %c0_38] : memref<128x128xf32, #tpu.memory_space<vmem>>, vector<128x128xf32>
    %cst_39 = arith.constant dense<0.000000e+00> : vector<1x128xf32>
    %64 = tpu.matmul %62, %63, %cst_39 {dimension_numbers = #tpu.dot_dimension_numbers<[1], [0], [0], [1], [0, 0, 1, 1], [], []>} : vector<1x128xf32>, vector<128x128xf32>, vector<1x128xf32> -> vector<1x128xf32>
    %c0_40 = arith.constant 0 : index
    %c0_41 = arith.constant 0 : index
    %65 = vector.load %arg15[%c0_40, %c0_41] : memref<1x128xf32, #tpu.memory_space<vmem>>, vector<1x128xf32>
    %66 = arith.addf %64, %65 : vector<1x128xf32>
    %67 = vector.broadcast %66 : vector<1x128xf32> to vector<2x128xf32>
    %68 = arith.maximumf %22, %67 : vector<2x128xf32>
    %c0_42 = arith.constant 0 : index
    %c0_43 = arith.constant 0 : index
    %69 = vector.load %arg16[%c0_42, %c0_43] : memref<128x128xf32, #tpu.memory_space<vmem>>, vector<128x128xf32>
    %cst_44 = arith.constant dense<0.000000e+00> : vector<2x128xf32>
    %70 = tpu.matmul %68, %69, %cst_44 {dimension_numbers = #tpu.dot_dimension_numbers<[1], [0], [0], [1], [0, 0, 1, 1], [], []>} : vector<2x128xf32>, vector<128x128xf32>, vector<2x128xf32> -> vector<2x128xf32>
    %c0_45 = arith.constant 0 : index
    %c0_46 = arith.constant 0 : index
    %71 = vector.load %arg17[%c0_45, %c0_46] : memref<1x128xf32, #tpu.memory_space<vmem>>, vector<1x128xf32>
    %72 = vector.broadcast %71 : vector<1x128xf32> to vector<2x128xf32>
    %73 = arith.addf %70, %72 : vector<2x128xf32>
    %cst_47 = arith.constant dense<0xFF800000> : vector<2xf32>
    %74 = vector.multi_reduction <maximumf>, %73, %cst_47 [1] : vector<2x128xf32> to vector<2xf32>
    %75 = vector.shape_cast %74 : vector<2xf32> to vector<2x1xf32>
    %76 = vector.broadcast %75 : vector<2x1xf32> to vector<2x128xf32>
    %77 = arith.subf %73, %76 : vector<2x128xf32>
    %78 = math.exp %77 : vector<2x128xf32>
    %cst_48 = arith.constant dense<0.000000e+00> : vector<2xf32>
    %79 = vector.multi_reduction <add>, %78, %cst_48 [1] : vector<2x128xf32> to vector<2xf32>
    %80 = vector.shape_cast %79 : vector<2xf32> to vector<2x1xf32>
    %81 = tpu.reciprocal %80 {approx = true} : vector<2x1xf32> -> vector<2x1xf32>
    %82 = vector.broadcast %81 : vector<2x1xf32> to vector<2x128xf32>
    %83 = arith.mulf %78, %82 : vector<2x128xf32>
    %c0_49 = arith.constant 0 : index
    %c0_50 = arith.constant 0 : index
    %84 = vector.load %arg18[%c0_49, %c0_50] : memref<2x128xf32, #tpu.memory_space<vmem>>, vector<2x128xf32>
    tpu.vector_store %arg18[%c0_49, %c0_50], %83 {strides = array<i32>} : memref<2x128xf32, #tpu.memory_space<vmem>>, vector<2x128xf32>,
    return
  }
}

</mosaic_0001>

<llo_original>
// kernel: tpu_custom_call.1
$region0: #{tpu_custom_call.1}
  #allocation0 [shape = 'u32[]', space=smem, size = 0x4, offset = 0x4, fixed_abs, tag = 'smem constant byte address 0x4 - core index']
  #allocation1 [shape = 'u32[144,128]{1,0:T(1,128)}', space=vmem, size = 0x12000, scoped, tag = 'internal scratch']
  %s0 = inlined_call_operand.hbm [shape: s32[2,8], index: 0, kind: input, shape index: {}]
  %s1 = inlined_call_operand.vmem [shape: s32[2,8], index: 1, kind: input, shape index: {}]
  %s2 = inlined_call_operand.hbm [shape: f32[1,1024], index: 2, kind: input, shape index: {}]
  %s3 = inlined_call_operand.hbm [shape: f32[32,128], index: 3, kind: input, shape index: {}]
  %s4 = inlined_call_operand.hbm [shape: f32[128,128], index: 4, kind: input, shape index: {}]
  %s5 = inlined_call_operand.vmem [shape: f32[1,128], index: 5, kind: input, shape index: {}]
  %s6 = inlined_call_operand.hbm [shape: f32[128,128], index: 6, kind: input, shape index: {}]
  %s7 = inlined_call_operand.vmem [shape: f32[1,128], index: 7, kind: input, shape index: {}]
  %s8 = inlined_call_operand.hbm [shape: f32[1024,128], index: 8, kind: input, shape index: {}]
  %s9 = inlined_call_operand.vmem [shape: f32[1,128], index: 9, kind: input, shape index: {}]
  %s10 = inlined_call_operand.hbm [shape: f32[128,128], index: 10, kind: input, shape index: {}]
  %s11 = inlined_call_operand.vmem [shape: f32[1,128], index: 11, kind: input, shape index: {}]
  %s12 = inlined_call_operand.hbm [shape: f32[128,384], index: 12, kind: input, shape index: {}]
  %s13 = inlined_call_operand.vmem [shape: f32[1,384], index: 13, kind: input, shape index: {}]
  %s14 = inlined_call_operand.hbm [shape: f32[128,128], index: 14, kind: input, shape index: {}]
  %s15 = inlined_call_operand.vmem [shape: f32[1,128], index: 15, kind: input, shape index: {}]
  %s16 = inlined_call_operand.hbm [shape: f32[128,128], index: 16, kind: input, shape index: {}]
  %s17 = inlined_call_operand.vmem [shape: f32[1,128], index: 17, kind: input, shape index: {}]
  %s18 = inlined_call_operand.hbm [shape: f32[2,128], index: 18, kind: output, shape index: {}]
  %s19 = sld [smem:[#allocation0]]
  $region122: #{tpu_custom_call.1} parent=0
    _
  %s21 = ssub.s32 1, %s19
  %s22 = scalar_select 0, %s21, %s19
  $region1: #{tpu_custom_call.1} parent=0
    #allocation2 [shape = 'u8[1024]{0}', space=vmem, size = 0x400, scoped, tag = 'input window, operand 0, single buffered']
    #allocation3 [shape = 's32[1]{0}', space=sflag, size = 0x4, scoped, tag = 'scoped memory for tpu_custom_call.1']
    #allocation4 [shape = 's32[1]{0}', space=sflag, size = 0x4, scoped, tag = 'scoped memory for tpu_custom_call.1']
    #allocation5 [shape = 'u8[4096]{0}', space=vmem, size = 0x1000, scoped, tag = 'input window, operand 2, single buffered']
    #allocation6 [shape = 's32[1]{0}', space=sflag, size = 0x4, scoped, tag = 'scoped memory for tpu_custom_call.1']
    #allocation7 [shape = 'u8[16384]{0}', space=vmem, size = 0x4000, scoped, tag = 'input window, operand 3, single buffered']
    #allocation8 [shape = 'u8[65536]{0}', space=vmem, size = 0x10000, scoped, tag = 'input window, operand 4, single buffered']
    #allocation9 [shape = 's32[1]{0}', space=sflag, size = 0x4, scoped, tag = 'scoped memory for tpu_custom_call.1']
    #allocation10 [shape = 'u8[65536]{0}', space=vmem, size = 0x10000, scoped, tag = 'input window, operand 6, single buffered']
    #allocation11 [shape = 'u8[524288]{0}', space=vmem, size = 0x80000, scoped, tag = 'input window, operand 8, single buffered']
    #allocation12 [shape = 's32[1]{0}', space=sflag, size = 0x4, scoped, tag = 'scoped memory for tpu_custom_call.1']
    #allocation13 [shape = 'u8[65536]{0}', space=vmem, size = 0x10000, scoped, tag = 'input window, operand 10, single buffered']
    #allocation14 [shape = 'u8[196608]{0}', space=vmem, size = 0x30000, scoped, tag = 'input window, operand 12, single buffered']
    #allocation15 [shape = 's32[1]{0}', space=sflag, size = 0x4, scoped, tag = 'scoped memory for tpu_custom_call.1']
    #allocation16 [shape = 'u8[65536]{0}', space=vmem, size = 0x10000, scoped, tag = 'input window, operand 14, single buffered']
    #allocation17 [shape = 'u8[65536]{0}', space=vmem, size = 0x10000, scoped, tag = 'input window, operand 16, single buffered']
    #allocation18 [shape = 's32[1]{0}', space=sflag, size = 0x4, scoped, tag = 'scoped memory for tpu_custom_call.1']
    #allocation19 [shape = 'u8[1024]{0}', space=vmem, size = 0x400, scoped, tag = 'output window, operand 0, single buffered']
    %23 = vsyncpa [#allocation3], 0
    %24 = vsyncpa [#allocation6], 0
    %25 = vsyncpa [#allocation9], 0
    %26 = vsyncpa [#allocation12], 0
    %27 = vsyncpa [#allocation15], 0
    %28 = vsyncpa [#allocation18], 0
    %29 = vsyncpa [#allocation4], 0
    // Predicated region
    $region2: #{tpu_custom_call.1} parent=1 // pred_check
      _
    $region3: #{tpu_custom_call.1} parent=1 // pred_check_branch
      %31 = sbr.rel (0) target = $region5
    $region4: #{tpu_custom_call.1} parent=1 // pred_region
      %s33 = ssub.s32 32, 32
      %34 = vsyncadd [#allocation3], %s33
      %s36 = sshll.u32 [#allocation2], 4
      %s37 = int_to_ptr.vmem [resolvable:$true] %s36
      %39 = dma.hbm_to_vmem [thread:$0]  %s0, 32, %s37, [#allocation3]
    $region5: #{tpu_custom_call.1} parent=1 // pred_fallthru
      _
    // Predicated region
    $region6: #{tpu_custom_call.1} parent=1 // pred_check
      _
    $region7: #{tpu_custom_call.1} parent=1 // pred_check_branch
      %41 = sbr.rel (0) target = $region9
    $region8: #{tpu_custom_call.1} parent=1 // pred_region
      _
    $region9: #{tpu_custom_call.1} parent=1 // pred_fallthru
      _
    // Predicated region
    $region10: #{tpu_custom_call.1} parent=1 // pred_check
      _
    $region11: #{tpu_custom_call.1} parent=1 // pred_check_branch
      %43 = sbr.rel (0) target = $region13
    $region12: #{tpu_custom_call.1} parent=1 // pred_region
      %s45 = ssub.s32 128, 128
      %46 = vsyncadd [#allocation6], %s45
      %s48 = sshll.u32 [#allocation5], 4
      %s49 = int_to_ptr.vmem [resolvable:$true] %s48
      %51 = dma.hbm_to_vmem [thread:$0]  %s2, 128, %s49, [#allocation6]
    $region13: #{tpu_custom_call.1} parent=1 // pred_fallthru
      _
    // Predicated region
    $region14: #{tpu_custom_call.1} parent=1 // pred_check
      _
    $region15: #{tpu_custom_call.1} parent=1 // pred_check_branch
      %53 = sbr.rel (0) target = $region17
    $region16: #{tpu_custom_call.1} parent=1 // pred_region
      %s55 = ssub.s32 512, 512
      %56 = vsyncadd [#allocation6], %s55
      %s57 = sshll.u32 [#allocation7], 4
      %s58 = int_to_ptr.vmem [resolvable:$true] %s57
      %63 = dma.hbm_to_vmem [thread:$0]  %s3, 512, %s58, [#allocation6], 128, 128, 8
    $region17: #{tpu_custom_call.1} parent=1 // pred_fallthru
      _
    // Predicated region
    $region18: #{tpu_custom_call.1} parent=1 // pred_check
      _
    $region19: #{tpu_custom_call.1} parent=1 // pred_check_branch
      %65 = sbr.rel (0) target = $region21
    $region20: #{tpu_custom_call.1} parent=1 // pred_region
      %s67 = ssub.s32 2048, 2048
      %68 = vsyncadd [#allocation9], %s67
      %s69 = sshll.u32 [#allocation8], 4
      %s70 = int_to_ptr.vmem [resolvable:$true] %s69
      %75 = dma.hbm_to_vmem [thread:$0]  %s4, 2048, %s70, [#allocation9], 128, 128, 8
    $region21: #{tpu_custom_call.1} parent=1 // pred_fallthru
      _
    // Predicated region
    $region22: #{tpu_custom_call.1} parent=1 // pred_check
      _
    $region23: #{tpu_custom_call.1} parent=1 // pred_check_branch
      %77 = sbr.rel (0) target = $region25
    $region24: #{tpu_custom_call.1} parent=1 // pred_region
      _
    $region25: #{tpu_custom_call.1} parent=1 // pred_fallthru
      _
    // Predicated region
    $region26: #{tpu_custom_call.1} parent=1 // pred_check
      _
    $region27: #{tpu_custom_call.1} parent=1 // pred_check_branch
      %79 = sbr.rel (0) target = $region29
    $region28: #{tpu_custom_call.1} parent=1 // pred_region
      %s81 = ssub.s32 2048, 2048
      %82 = vsyncadd [#allocation9], %s81
      %s83 = sshll.u32 [#allocation10], 4
      %s84 = int_to_ptr.vmem [resolvable:$true] %s83
      %89 = dma.hbm_to_vmem [thread:$0]  %s6, 2048, %s84, [#allocation9], 128, 128, 8
    $region29: #{tpu_custom_call.1} parent=1 // pred_fallthru
      _
    // Predicated region
    $region30: #{tpu_custom_call.1} parent=1 // pred_check
      _
    $region31: #{tpu_custom_call.1} parent=1 // pred_check_branch
      %91 = sbr.rel (0) target = $region33
    $region32: #{tpu_custom_call.1} parent=1 // pred_region
      _
    $region33: #{tpu_custom_call.1} parent=1 // pred_fallthru
      _
    // Predicated region
    $region34: #{tpu_custom_call.1} parent=1 // pred_check
      _
    $region35: #{tpu_custom_call.1} parent=1 // pred_check_branch
      %93 = sbr.rel (0) target = $region37
    $region36: #{tpu_custom_call.1} parent=1 // pred_region
      %s95 = ssub.s32 16384, 16384
      %96 = vsyncadd [#allocation12], %s95
      %s97 = sshll.u32 [#allocation11], 4
      %s98 = int_to_ptr.vmem [resolvable:$true] %s97
      %103 = dma.hbm_to_vmem [thread:$0]  %s8, 16384, %s98, [#allocation12], 128, 128, 8
    $region37: #{tpu_custom_call.1} parent=1 // pred_fallthru
      _
    // Predicated region
    $region38: #{tpu_custom_call.1} parent=1 // pred_check
      _
    $region39: #{tpu_custom_call.1} parent=1 // pred_check_branch
      %105 = sbr.rel (0) target = $region41
    $region40: #{tpu_custom_call.1} parent=1 // pred_region
      _
    $region41: #{tpu_custom_call.1} parent=1 // pred_fallthru
      _
    // Predicated region
    $region42: #{tpu_custom_call.1} parent=1 // pred_check
      _
    $region43: #{tpu_custom_call.1} parent=1 // pred_check_branch
      %107 = sbr.rel (0) target = $region45
    $region44: #{tpu_custom_call.1} parent=1 // pred_region
      %s109 = ssub.s32 2048, 2048
      %110 = vsyncadd [#allocation12], %s109
      %s111 = sshll.u32 [#allocation13], 4
      %s112 = int_to_ptr.vmem [resolvable:$true] %s111
      %117 = dma.hbm_to_vmem [thread:$0]  %s10, 2048, %s112, [#allocation12], 128, 128, 8
    $region45: #{tpu_custom_call.1} parent=1 // pred_fallthru
      _
    // Predicated region
    $region46: #{tpu_custom_call.1} parent=1 // pred_check
      _
    $region47: #{tpu_custom_call.1} parent=1 // pred_check_branch
      %119 = sbr.rel (0) target = $region49
    $region48: #{tpu_custom_call.1} parent=1 // pred_region
      _
    $region49: #{tpu_custom_call.1} parent=1 // pred_fallthru
      _
    // Predicated region
    $region50: #{tpu_custom_call.1} parent=1 // pred_check
      _
    $region51: #{tpu_custom_call.1} parent=1 // pred_check_branch
      %121 = sbr.rel (0) target = $region53
    $region52: #{tpu_custom_call.1} parent=1 // pred_region
      %s123 = ssub.s32 6144, 6144
      %124 = vsyncadd [#allocation15], %s123
      %s125 = sshll.u32 [#allocation14], 4
      %s126 = int_to_ptr.vmem [resolvable:$true] %s125
      %131 = dma.hbm_to_vmem [thread:$0]  %s12, 6144, %s126, [#allocation15], 384, 384, 24
    $region53: #{tpu_custom_call.1} parent=1 // pred_fallthru
      _
    // Predicated region
    $region54: #{tpu_custom_call.1} parent=1 // pred_check
      _
    $region55: #{tpu_custom_call.1} parent=1 // pred_check_branch
      %133 = sbr.rel (0) target = $region57
    $region56: #{tpu_custom_call.1} parent=1 // pred_region
      _
    $region57: #{tpu_custom_call.1} parent=1 // pred_fallthru
      _
    // Predicated region
    $region58: #{tpu_custom_call.1} parent=1 // pred_check
      _
    $region59: #{tpu_custom_call.1} parent=1 // pred_check_branch
      %135 = sbr.rel (0) target = $region61
    $region60: #{tpu_custom_call.1} parent=1 // pred_region
      %s137 = ssub.s32 2048, 2048
      %138 = vsyncadd [#allocation15], %s137
      %s139 = sshll.u32 [#allocation16], 4
      %s140 = int_to_ptr.vmem [resolvable:$true] %s139
      %145 = dma.hbm_to_vmem [thread:$0]  %s14, 2048, %s140, [#allocation15], 128, 128, 8
    $region61: #{tpu_custom_call.1} parent=1 // pred_fallthru
      _
    // Predicated region
    $region62: #{tpu_custom_call.1} parent=1 // pred_check
      _
    $region63: #{tpu_custom_call.1} parent=1 // pred_check_branch
      %147 = sbr.rel (0) target = $region65
    $region64: #{tpu_custom_call.1} parent=1 // pred_region
      _
    $region65: #{tpu_custom_call.1} parent=1 // pred_fallthru
      _
    // Predicated region
    $region66: #{tpu_custom_call.1} parent=1 // pred_check
      _
    $region67: #{tpu_custom_call.1} parent=1 // pred_check_branch
      %149 = sbr.rel (0) target = $region69
    $region68: #{tpu_custom_call.1} parent=1 // pred_region
      %s151 = ssub.s32 2048, 2048
      %152 = vsyncadd [#allocation18], %s151
      %s153 = sshll.u32 [#allocation17], 4
      %s154 = int_to_ptr.vmem [resolvable:$true] %s153
      %159 = dma.hbm_to_vmem [thread:$0]  %s16, 2048, %s154, [#allocation18], 128, 128, 8
    $region69: #{tpu_custom_call.1} parent=1 // pred_fallthru
      _
    // Predicated region
    $region70: #{tpu_custom_call.1} parent=1 // pred_check
      _
    $region71: #{tpu_custom_call.1} parent=1 // pred_check_branch
      %161 = sbr.rel (0) target = $region73
    $region72: #{tpu_custom_call.1} parent=1 // pred_region
      _
    $region73: #{tpu_custom_call.1} parent=1 // pred_fallthru
      _
    // Predicated region
    $region74: #{tpu_custom_call.1} parent=1 // pred_check
      _
    $region75: #{tpu_custom_call.1} parent=1 // pred_check_branch
      %163 = sbr.rel (0) target = $region77
    $region76: #{tpu_custom_call.1} parent=1 // pred_region
      %164 = dma.done [#allocation3], 32
    $region77: #{tpu_custom_call.1} parent=1 // pred_fallthru
      _
    // Predicated region
    $region78: #{tpu_custom_call.1} parent=1 // pred_check
      _
    $region79: #{tpu_custom_call.1} parent=1 // pred_check_branch
      %166 = sbr.rel (0) target = $region81
    $region80: #{tpu_custom_call.1} parent=1 // pred_region
      %167 = dma.done [#allocation6], 128
    $region81: #{tpu_custom_call.1} parent=1 // pred_fallthru
      _
    // Predicated region
    $region82: #{tpu_custom_call.1} parent=1 // pred_check
      _
    $region83: #{tpu_custom_call.1} parent=1 // pred_check_branch
      %169 = sbr.rel (0) target = $region85
    $region84: #{tpu_custom_call.1} parent=1 // pred_region
      %170 = dma.done [#allocation6], 512
    $region85: #{tpu_custom_call.1} parent=1 // pred_fallthru
      _
    // Predicated region
    $region86: #{tpu_custom_call.1} parent=1 // pred_check
      _
    $region87: #{tpu_custom_call.1} parent=1 // pred_check_branch
      %172 = sbr.rel (0) target = $region89
    $region88: #{tpu_custom_call.1} parent=1 // pred_region
      %173 = dma.done [#allocation9], 2048
    $region89: #{tpu_custom_call.1} parent=1 // pred_fallthru
      _
    // Predicated region
    $region90: #{tpu_custom_call.1} parent=1 // pred_check
      _
    $region91: #{tpu_custom_call.1} parent=1 // pred_check_branch
      %175 = sbr.rel (0) target = $region93
    $region92: #{tpu_custom_call.1} parent=1 // pred_region
      %176 = dma.done [#allocation9], 2048
    $region93: #{tpu_custom_call.1} parent=1 // pred_fallthru
      _
    // Predicated region
    $region94: #{tpu_custom_call.1} parent=1 // pred_check
      _
    $region95: #{tpu_custom_call.1} parent=1 // pred_check_branch
      %178 = sbr.rel (0) target = $region97
    $region96: #{tpu_custom_call.1} parent=1 // pred_region
      %179 = dma.done [#allocation12], 16384
    $region97: #{tpu_custom_call.1} parent=1 // pred_fallthru
      _
    // Predicated region
    $region98: #{tpu_custom_call.1} parent=1 // pred_check
      _
    $region99: #{tpu_custom_call.1} parent=1 // pred_check_branch
      %181 = sbr.rel (0) target = $region101
    $region100: #{tpu_custom_call.1} parent=1 // pred_region
      %182 = dma.done [#allocation12], 2048
    $region101: #{tpu_custom_call.1} parent=1 // pred_fallthru
      _
    // Predicated region
    $region102: #{tpu_custom_call.1} parent=1 // pred_check
      _
    $region103: #{tpu_custom_call.1} parent=1 // pred_check_branch
      %184 = sbr.rel (0) target = $region105
    $region104: #{tpu_custom_call.1} parent=1 // pred_region
      %185 = dma.done [#allocation15], 6144
    $region105: #{tpu_custom_call.1} parent=1 // pred_fallthru
      _
    // Predicated region
    $region106: #{tpu_custom_call.1} parent=1 // pred_check
      _
    $region107: #{tpu_custom_call.1} parent=1 // pred_check_branch
      %187 = sbr.rel (0) target = $region109
    $region108: #{tpu_custom_call.1} parent=1 // pred_region
      %188 = dma.done [#allocation15], 2048
    $region109: #{tpu_custom_call.1} parent=1 // pred_fallthru
      _
    // Predicated region
    $region110: #{tpu_custom_call.1} parent=1 // pred_check
      _
    $region111: #{tpu_custom_call.1} parent=1 // pred_check_branch
      %190 = sbr.rel (0) target = $region113
    $region112: #{tpu_custom_call.1} parent=1 // pred_region
      %191 = dma.done [#allocation18], 2048
    $region113: #{tpu_custom_call.1} parent=1 // pred_fallthru
      _
    %v192 = vld [vmem:[#allocation2] sm:$0x3]
    %v193 = vlaneseq
    %v194 = vand.u32 %v193, 127
    %195 = vset.pattern.permute.xlu0 0
    %196 = vperm.xlu0 %195, %v192
    %v197 = vpop.permute.xlu0 %196
    %vm198 = vcmp.eq.s32.totalorder %v194, %v197
    %v199 = vsel %vm198, 1, 0
    %v200 = vcvt.s32.f32 %v199
    %v201 = vld [vmem:[#allocation7] sm:$0xff]
    %v202 = vld [vmem:[#allocation7 + $0x8] sm:$0xff]
    %v203 = vld [vmem:[#allocation7 + $0x10] sm:$0xff]
    %v204 = vld [vmem:[#allocation7 + $0x18] sm:$0xff]
    %vm205 = vcmask 261120
    %v207 = vsel %vm205, %v200, 0
    %209 = vmatprep.subr.mxu0 0.0
    %210 = vmatpush1.msra.mxu0 %v201
    %211 = vmatprep.subr.mxu0 0.0
    %212 = vmatpush1.msra.mxu0 %v202
    %213 = vmatprep.subr.mxu0 0.0
    %214 = vmatpush1.msra.mxu0 %v203
    %215 = vmatprep.subr.mxu0 0.0
    %216 = vmatpush1.msra.mxu0 %v204
    %217 = vmatprep.subr.mxu0 0.0
    %218 = vmatpush1.msra.mxu0 0.0
    %219 = vmatprep.subr.mxu0 0.0
    %220 = vmatpush1.msra.mxu0 0.0
    %221 = vmatprep.subr.mxu0 0.0
    %222 = vmatpush1.msra.mxu0 0.0
    %223 = vmatprep.subr.mxu0 0.0
    %224 = vmatpush1.msra.mxu0 0.0
    %225 = vmatprep.subr.mxu0 0.0
    %226 = vmatpush1.msra.mxu0 0.0
    %227 = vmatprep.subr.mxu0 0.0
    %228 = vmatpush1.msra.mxu0 0.0
    %229 = vmatprep.subr.mxu0 0.0
    %230 = vmatpush1.msra.mxu0 0.0
    %231 = vmatprep.subr.mxu0 0.0
    %232 = vmatpush1.msra.mxu0 0.0
    %233 = vmatprep.subr.mxu0 0.0
    %234 = vmatpush1.msra.mxu0 0.0
    %235 = vmatprep.subr.mxu0 0.0
    %236 = vmatpush1.msra.mxu0 0.0
    %237 = vmatprep.subr.mxu0 0.0
    %238 = vmatpush1.msra.mxu0 0.0
    %239 = vmatprep.subr.mxu0 0.0
    %240 = vmatpush1.msra.mxu0 0.0
    %241 = vmatprep.subr.mxu0 0.0
    %242 = vmatpush1.msra.mxu0 0.0
    %243 = vmatprep.subr.mxu0 0.0
    %244 = vmatpush1.msra.mxu0 0.0
    %245 = vmatprep.subr.mxu0 0.0
    %246 = vmatpush1.msra.mxu0 0.0
    %247 = vmatprep.subr.mxu0 0.0
    %248 = vmatpush1.msra.mxu0 0.0
    %249 = vmatprep.subr.mxu0 0.0
    %250 = vmatpush1.msra.mxu0 0.0
    %251 = vmatprep.subr.mxu0 0.0
    %252 = vmatpush1.msra.mxu0 0.0
    %253 = vmatprep.subr.mxu0 0.0
    %254 = vmatpush1.msra.mxu0 0.0
    %255 = vmatprep.subr.mxu0 0.0
    %256 = vmatpush1.msra.mxu0 0.0
    %257 = vmatprep.subr.mxu0 0.0
    %258 = vmatpush1.msra.mxu0 0.0
    %259 = vmatprep.subr.mxu0 0.0
    %260 = vmatpush1.msra.mxu0 0.0
    %261 = vmatprep.subr.mxu0 0.0
    %262 = vmatpush1.msra.mxu0 0.0
    %263 = vmatprep.subr.mxu0 0.0
    %264 = vmatpush1.msra.mxu0 0.0
    %265 = vmatprep.subr.mxu0 0.0
    %266 = vmatpush1.msra.mxu0 0.0
    %267 = vmatprep.subr.mxu0 0.0
    %268 = vmatpush1.msra.mxu0 0.0
    %269 = vmatprep.subr.mxu0 0.0
    %270 = vmatpush1.msra.mxu0 0.0
    %271 = vmatprep.subr.mxu0 0.0
    %272 = vmatpush1.msra.mxu0 0.0
    %273 = vmatprep.mubr.f32.mxu0 0.0
    %274 = vmatmul.mubr.f32.gmra.mrb[0].mxu0 %v207
    %v275 = vpop.f32.mrb[0].mxu0
    %v276 = vadd.f32 0.0, %v275
    %v277 = vpop.f32.mrb[0].mxu0
    %278 = vdwg.mxu0
    %v279 = vld [vmem:[%s1] sm:$0x3]
    %v280 = vcvt.s32.f32 %v279
    %282 = vset.pattern.permute.xlu0 0
    %283 = vperm.xlu0 %282, %v280
    %v284 = vpop.permute.xlu0 %283
    %v286 = vmul.f32 %v276, %v284
    %v287 = vld [vmem:[#allocation8] sm:$0xff]
    %v288 = vld [vmem:[#allocation8 + $0x8] sm:$0xff]
    %v289 = vld [vmem:[#allocation8 + $0x10] sm:$0xff]
    %v290 = vld [vmem:[#allocation8 + $0x18] sm:$0xff]
    %v291 = vld [vmem:[#allocation8 + $0x20] sm:$0xff]
    %v292 = vld [vmem:[#allocation8 + $0x28] sm:$0xff]
    %v293 = vld [vmem:[#allocation8 + $0x30] sm:$0xff]
    %v294 = vld [vmem:[#allocation8 + $0x38] sm:$0xff]
    %v295 = vld [vmem:[#allocation8 + $0x40] sm:$0xff]
    %v296 = vld [vmem:[#allocation8 + $0x48] sm:$0xff]
    %v297 = vld [vmem:[#allocation8 + $0x50] sm:$0xff]
    %v298 = vld [vmem:[#allocation8 + $0x58] sm:$0xff]
    %v299 = vld [vmem:[#allocation8 + $0x60] sm:$0xff]
    %v300 = vld [vmem:[#allocation8 + $0x68] sm:$0xff]
    %v301 = vld [vmem:[#allocation8 + $0x70] sm:$0xff]
    %v302 = vld [vmem:[#allocation8 + $0x78] sm:$0xff]
    %v303 = vld [vmem:[%s5] sm:$0x1]
    %v305 = vlaneseq
    %v306 = vshrl.u32 %v305, 7
    %v307 = vsub.s32 0, %v306
    %v308 = vrot.slane %v303, %v307
    %310 = vmatprep.subr.mxu0 0.0
    %311 = vmatpush1.msra.mxu0 %v287
    %312 = vmatprep.subr.mxu0 0.0
    %313 = vmatpush1.msra.mxu0 %v288
    %314 = vmatprep.subr.mxu0 0.0
    %315 = vmatpush1.msra.mxu0 %v289
    %316 = vmatprep.subr.mxu0 0.0
    %317 = vmatpush1.msra.mxu0 %v290
    %318 = vmatprep.subr.mxu0 0.0
    %319 = vmatpush1.msra.mxu0 %v291
    %320 = vmatprep.subr.mxu0 0.0
    %321 = vmatpush1.msra.mxu0 %v292
    %322 = vmatprep.subr.mxu0 0.0
    %323 = vmatpush1.msra.mxu0 %v293
    %324 = vmatprep.subr.mxu0 0.0
    %325 = vmatpush1.msra.mxu0 %v294
    %326 = vmatprep.subr.mxu0 0.0
    %327 = vmatpush1.msra.mxu0 %v295
    %328 = vmatprep.subr.mxu0 0.0
    %329 = vmatpush1.msra.mxu0 %v296
    %330 = vmatprep.subr.mxu0 0.0
    %331 = vmatpush1.msra.mxu0 %v297
    %332 = vmatprep.subr.mxu0 0.0
    %333 = vmatpush1.msra.mxu0 %v298
    %334 = vmatprep.subr.mxu0 0.0
    %335 = vmatpush1.msra.mxu0 %v299
    %336 = vmatprep.subr.mxu0 0.0
    %337 = vmatpush1.msra.mxu0 %v300
    %338 = vmatprep.subr.mxu0 0.0
    %339 = vmatpush1.msra.mxu0 %v301
    %340 = vmatprep.subr.mxu0 0.0
    %341 = vmatpush1.msra.mxu0 %v302
    %342 = vmatprep.subr.mxu0 0.0
    %343 = vmatpush1.msra.mxu0 0.0
    %344 = vmatprep.subr.mxu0 0.0
    %345 = vmatpush1.msra.mxu0 0.0
    %346 = vmatprep.subr.mxu0 0.0
    %347 = vmatpush1.msra.mxu0 0.0
    %348 = vmatprep.subr.mxu0 0.0
    %349 = vmatpush1.msra.mxu0 0.0
    %350 = vmatprep.subr.mxu0 0.0
    %351 = vmatpush1.msra.mxu0 0.0
    %352 = vmatprep.subr.mxu0 0.0
    %353 = vmatpush1.msra.mxu0 0.0
    %354 = vmatprep.subr.mxu0 0.0
    %355 = vmatpush1.msra.mxu0 0.0
    %356 = vmatprep.subr.mxu0 0.0
    %357 = vmatpush1.msra.mxu0 0.0
    %358 = vmatprep.subr.mxu0 0.0
    %359 = vmatpush1.msra.mxu0 0.0
    %360 = vmatprep.subr.mxu0 0.0
    %361 = vmatpush1.msra.mxu0 0.0
    %362 = vmatprep.subr.mxu0 0.0
    %363 = vmatpush1.msra.mxu0 0.0
    %364 = vmatprep.subr.mxu0 0.0
    %365 = vmatpush1.msra.mxu0 0.0
    %366 = vmatprep.subr.mxu0 0.0
    %367 = vmatpush1.msra.mxu0 0.0
    %368 = vmatprep.subr.mxu0 0.0
    %369 = vmatpush1.msra.mxu0 0.0
    %370 = vmatprep.subr.mxu0 0.0
    %371 = vmatpush1.msra.mxu0 0.0
    %372 = vmatprep.subr.mxu0 0.0
    %373 = vmatpush1.msra.mxu0 0.0
    %374 = vmatprep.mubr.f32.mxu0 0.0
    %375 = vmatmul.mubr.f32.gmra.mrb[0].mxu0 %v286
    %v376 = vpop.f32.mrb[0].mxu0
    %v377 = vadd.f32 %v308, %v376
    %v378 = vpop.f32.mrb[0].mxu0
    %379 = vdwg.mxu0
    %v380 = vtanh.pop %v377
    %v381 = vld [vmem:[#allocation10] sm:$0xff]
    %v382 = vld [vmem:[#allocation10 + $0x8] sm:$0xff]
    %v383 = vld [vmem:[#allocation10 + $0x10] sm:$0xff]
    %v384 = vld [vmem:[#allocation10 + $0x18] sm:$0xff]
    %v385 = vld [vmem:[#allocation10 + $0x20] sm:$0xff]
    %v386 = vld [vmem:[#allocation10 + $0x28] sm:$0xff]
    %v387 = vld [vmem:[#allocation10 + $0x30] sm:$0xff]
    %v388 = vld [vmem:[#allocation10 + $0x38] sm:$0xff]
    %v389 = vld [vmem:[#allocation10 + $0x40] sm:$0xff]
    %v390 = vld [vmem:[#allocation10 + $0x48] sm:$0xff]
    %v391 = vld [vmem:[#allocation10 + $0x50] sm:$0xff]
    %v392 = vld [vmem:[#allocation10 + $0x58] sm:$0xff]
    %v393 = vld [vmem:[#allocation10 + $0x60] sm:$0xff]
    %v394 = vld [vmem:[#allocation10 + $0x68] sm:$0xff]
    %v395 = vld [vmem:[#allocation10 + $0x70] sm:$0xff]
    %v396 = vld [vmem:[#allocation10 + $0x78] sm:$0xff]
    %v397 = vld [vmem:[%s7] sm:$0x1]
    %v399 = vlaneseq
    %v400 = vshrl.u32 %v399, 7
    %v401 = vsub.s32 0, %v400
    %v402 = vrot.slane %v397, %v401
    %404 = vmatprep.subr.mxu0 0.0
    %405 = vmatpush1.msra.mxu0 %v381
    %406 = vmatprep.subr.mxu0 0.0
    %407 = vmatpush1.msra.mxu0 %v382
    %408 = vmatprep.subr.mxu0 0.0
    %409 = vmatpush1.msra.mxu0 %v383
    %410 = vmatprep.subr.mxu0 0.0
    %411 = vmatpush1.msra.mxu0 %v384
    %412 = vmatprep.subr.mxu0 0.0
    %413 = vmatpush1.msra.mxu0 %v385
    %414 = vmatprep.subr.mxu0 0.0
    %415 = vmatpush1.msra.mxu0 %v386
    %416 = vmatprep.subr.mxu0 0.0
    %417 = vmatpush1.msra.mxu0 %v387
    %418 = vmatprep.subr.mxu0 0.0
    %419 = vmatpush1.msra.mxu0 %v388
    %420 = vmatprep.subr.mxu0 0.0
    %421 = vmatpush1.msra.mxu0 %v389
    %422 = vmatprep.subr.mxu0 0.0
    %423 = vmatpush1.msra.mxu0 %v390
    %424 = vmatprep.subr.mxu0 0.0
    %425 = vmatpush1.msra.mxu0 %v391
    %426 = vmatprep.subr.mxu0 0.0
    %427 = vmatpush1.msra.mxu0 %v392
    %428 = vmatprep.subr.mxu0 0.0
    %429 = vmatpush1.msra.mxu0 %v393
    %430 = vmatprep.subr.mxu0 0.0
    %431 = vmatpush1.msra.mxu0 %v394
    %432 = vmatprep.subr.mxu0 0.0
    %433 = vmatpush1.msra.mxu0 %v395
    %434 = vmatprep.subr.mxu0 0.0
    %435 = vmatpush1.msra.mxu0 %v396
    %436 = vmatprep.subr.mxu0 0.0
    %437 = vmatpush1.msra.mxu0 0.0
    %438 = vmatprep.subr.mxu0 0.0
    %439 = vmatpush1.msra.mxu0 0.0
    %440 = vmatprep.subr.mxu0 0.0
    %441 = vmatpush1.msra.mxu0 0.0
    %442 = vmatprep.subr.mxu0 0.0
    %443 = vmatpush1.msra.mxu0 0.0
    %444 = vmatprep.subr.mxu0 0.0
    %445 = vmatpush1.msra.mxu0 0.0
    %446 = vmatprep.subr.mxu0 0.0
    %447 = vmatpush1.msra.mxu0 0.0
    %448 = vmatprep.subr.mxu0 0.0
    %449 = vmatpush1.msra.mxu0 0.0
    %450 = vmatprep.subr.mxu0 0.0
    %451 = vmatpush1.msra.mxu0 0.0
    %452 = vmatprep.subr.mxu0 0.0
    %453 = vmatpush1.msra.mxu0 0.0
    %454 = vmatprep.subr.mxu0 0.0
    %455 = vmatpush1.msra.mxu0 0.0
    %456 = vmatprep.subr.mxu0 0.0
    %457 = vmatpush1.msra.mxu0 0.0
    %458 = vmatprep.subr.mxu0 0.0
    %459 = vmatpush1.msra.mxu0 0.0
    %460 = vmatprep.subr.mxu0 0.0
    %461 = vmatpush1.msra.mxu0 0.0
    %462 = vmatprep.subr.mxu0 0.0
    %463 = vmatpush1.msra.mxu0 0.0
    %464 = vmatprep.subr.mxu0 0.0
    %465 = vmatpush1.msra.mxu0 0.0
    %466 = vmatprep.subr.mxu0 0.0
    %467 = vmatpush1.msra.mxu0 0.0
    %468 = vmatprep.mubr.f32.mxu0 0.0
    %469 = vmatmul.mubr.f32.gmra.mrb[0].mxu0 %v380
    %v470 = vpop.f32.mrb[0].mxu0
    %v471 = vadd.f32 %v402, %v470
    %v472 = vpop.f32.mrb[0].mxu0
    %473 = vdwg.mxu0
    %v474 = vld [vmem:[#allocation5] sm:$0xff]
    %v475 = vld [vmem:[#allocation11] sm:$0xff]
    %v476 = vld [vmem:[#allocation11 + $0x8] sm:$0xff]
    %v477 = vld [vmem:[#allocation11 + $0x10] sm:$0xff]
    %v478 = vld [vmem:[#allocation11 + $0x18] sm:$0xff]
    %v479 = vld [vmem:[#allocation11 + $0x20] sm:$0xff]
    %v480 = vld [vmem:[#allocation11 + $0x28] sm:$0xff]
    %v481 = vld [vmem:[#allocation11 + $0x30] sm:$0xff]
    %v482 = vld [vmem:[#allocation11 + $0x38] sm:$0xff]
    %v483 = vld [vmem:[#allocation11 + $0x40] sm:$0xff]
    %v484 = vld [vmem:[#allocation11 + $0x48] sm:$0xff]
    %v485 = vld [vmem:[#allocation11 + $0x50] sm:$0xff]
    %v486 = vld [vmem:[#allocation11 + $0x58] sm:$0xff]
    %v487 = vld [vmem:[#allocation11 + $0x60] sm:$0xff]
    %v488 = vld [vmem:[#allocation11 + $0x68] sm:$0xff]
    %v489 = vld [vmem:[#allocation11 + $0x70] sm:$0xff]
    %v490 = vld [vmem:[#allocation11 + $0x78] sm:$0xff]
    %v491 = vld [vmem:[#allocation11 + $0x80] sm:$0xff]
    %v492 = vld [vmem:[#allocation11 + $0x88] sm:$0xff]
    %v493 = vld [vmem:[#allocation11 + $0x90] sm:$0xff]
    %v494 = vld [vmem:[#allocation11 + $0x98] sm:$0xff]
    %v495 = vld [vmem:[#allocation11 + $0xa0] sm:$0xff]
    %v496 = vld [vmem:[#allocation11 + $0xa8] sm:$0xff]
    %v497 = vld [vmem:[#allocation11 + $0xb0] sm:$0xff]
    %v498 = vld [vmem:[#allocation11 + $0xb8] sm:$0xff]
    %v499 = vld [vmem:[#allocation11 + $0xc0] sm:$0xff]
    %v500 = vld [vmem:[#allocation11 + $0xc8] sm:$0xff]
    %v501 = vld [vmem:[#allocation11 + $0xd0] sm:$0xff]
    %v502 = vld [vmem:[#allocation11 + $0xd8] sm:$0xff]
    %v503 = vld [vmem:[#allocation11 + $0xe0] sm:$0xff]
    %v504 = vld [vmem:[#allocation11 + $0xe8] sm:$0xff]
    %v505 = vld [vmem:[#allocation11 + $0xf0] sm:$0xff]
    %v506 = vld [vmem:[#allocation11 + $0xf8] sm:$0xff]
    %v507 = vld [vmem:[#allocation11 + $0x100] sm:$0xff]
    %v508 = vld [vmem:[#allocation11 + $0x108] sm:$0xff]
    %v509 = vld [vmem:[#allocation11 + $0x110] sm:$0xff]
    %v510 = vld [vmem:[#allocation11 + $0x118] sm:$0xff]
    %v511 = vld [vmem:[#allocation11 + $0x120] sm:$0xff]
    %v512 = vld [vmem:[#allocation11 + $0x128] sm:$0xff]
    %v513 = vld [vmem:[#allocation11 + $0x130] sm:$0xff]
    %v514 = vld [vmem:[#allocation11 + $0x138] sm:$0xff]
    %v515 = vld [vmem:[#allocation11 + $0x140] sm:$0xff]
    %v516 = vld [vmem:[#allocation11 + $0x148] sm:$0xff]
    %v517 = vld [vmem:[#allocation11 + $0x150] sm:$0xff]
    %v518 = vld [vmem:[#allocation11 + $0x158] sm:$0xff]
    %v519 = vld [vmem:[#allocation11 + $0x160] sm:$0xff]
    %v520 = vld [vmem:[#allocation11 + $0x168] sm:$0xff]
    %v521 = vld [vmem:[#allocation11 + $0x170] sm:$0xff]
    %v522 = vld [vmem:[#allocation11 + $0x178] sm:$0xff]
    %v523 = vld [vmem:[#allocation11 + $0x180] sm:$0xff]
    %v524 = vld [vmem:[#allocation11 + $0x188] sm:$0xff]
    %v525 = vld [vmem:[#allocation11 + $0x190] sm:$0xff]
    %v526 = vld [vmem:[#allocation11 + $0x198] sm:$0xff]
    %v527 = vld [vmem:[#allocation11 + $0x1a0] sm:$0xff]
    %v528 = vld [vmem:[#allocation11 + $0x1a8] sm:$0xff]
    %v529 = vld [vmem:[#allocation11 + $0x1b0] sm:$0xff]
    %v530 = vld [vmem:[#allocation11 + $0x1b8] sm:$0xff]
    %v531 = vld [vmem:[#allocation11 + $0x1c0] sm:$0xff]
    %v532 = vld [vmem:[#allocation11 + $0x1c8] sm:$0xff]
    %v533 = vld [vmem:[#allocation11 + $0x1d0] sm:$0xff]
    %v534 = vld [vmem:[#allocation11 + $0x1d8] sm:$0xff]
    %v535 = vld [vmem:[#allocation11 + $0x1e0] sm:$0xff]
    %v536 = vld [vmem:[#allocation11 + $0x1e8] sm:$0xff]
    %v537 = vld [vmem:[#allocation11 + $0x1f0] sm:$0xff]
    %v538 = vld [vmem:[#allocation11 + $0x1f8] sm:$0xff]
    %v539 = vld [vmem:[#allocation11 + $0x200] sm:$0xff]
    %v540 = vld [vmem:[#allocation11 + $0x208] sm:$0xff]
    %v541 = vld [vmem:[#allocation11 + $0x210] sm:$0xff]
    %v542 = vld [vmem:[#allocation11 + $0x218] sm:$0xff]
    %v543 = vld [vmem:[#allocation11 + $0x220] sm:$0xff]
    %v544 = vld [vmem:[#allocation11 + $0x228] sm:$0xff]
    %v545 = vld [vmem:[#allocation11 + $0x230] sm:$0xff]
    %v546 = vld [vmem:[#allocation11 + $0x238] sm:$0xff]
    %v547 = vld [vmem:[#allocation11 + $0x240] sm:$0xff]
    %v548 = vld [vmem:[#allocation11 + $0x248] sm:$0xff]
    %v549 = vld [vmem:[#allocation11 + $0x250] sm:$0xff]
    %v550 = vld [vmem:[#allocation11 + $0x258] sm:$0xff]
    %v551 = vld [vmem:[#allocation11 + $0x260] sm:$0xff]
    %v552 = vld [vmem:[#allocation11 + $0x268] sm:$0xff]
    %v553 = vld [vmem:[#allocation11 + $0x270] sm:$0xff]
    %v554 = vld [vmem:[#allocation11 + $0x278] sm:$0xff]
    %v555 = vld [vmem:[#allocation11 + $0x280] sm:$0xff]
    %v556 = vld [vmem:[#allocation11 + $0x288] sm:$0xff]
    %v557 = vld [vmem:[#allocation11 + $0x290] sm:$0xff]
    %v558 = vld [vmem:[#allocation11 + $0x298] sm:$0xff]
    %v559 = vld [vmem:[#allocation11 + $0x2a0] sm:$0xff]
    %v560 = vld [vmem:[#allocation11 + $0x2a8] sm:$0xff]
    %v561 = vld [vmem:[#allocation11 + $0x2b0] sm:$0xff]
    %v562 = vld [vmem:[#allocation11 + $0x2b8] sm:$0xff]
    %v563 = vld [vmem:[#allocation11 + $0x2c0] sm:$0xff]
    %v564 = vld [vmem:[#allocation11 + $0x2c8] sm:$0xff]
    %v565 = vld [vmem:[#allocation11 + $0x2d0] sm:$0xff]
    %v566 = vld [vmem:[#allocation11 + $0x2d8] sm:$0xff]
    %v567 = vld [vmem:[#allocation11 + $0x2e0] sm:$0xff]
    %v568 = vld [vmem:[#allocation11 + $0x2e8] sm:$0xff]
    %v569 = vld [vmem:[#allocation11 + $0x2f0] sm:$0xff]
    %v570 = vld [vmem:[#allocation11 + $0x2f8] sm:$0xff]
    %v571 = vld [vmem:[#allocation11 + $0x300] sm:$0xff]
    %v572 = vld [vmem:[#allocation11 + $0x308] sm:$0xff]
    %v573 = vld [vmem:[#allocation11 + $0x310] sm:$0xff]
    %v574 = vld [vmem:[#allocation11 + $0x318] sm:$0xff]
    %v575 = vld [vmem:[#allocation11 + $0x320] sm:$0xff]
    %v576 = vld [vmem:[#allocation11 + $0x328] sm:$0xff]
    %v577 = vld [vmem:[#allocation11 + $0x330] sm:$0xff]
    %v578 = vld [vmem:[#allocation11 + $0x338] sm:$0xff]
    %v579 = vld [vmem:[#allocation11 + $0x340] sm:$0xff]
    %v580 = vld [vmem:[#allocation11 + $0x348] sm:$0xff]
    %v581 = vld [vmem:[#allocation11 + $0x350] sm:$0xff]
    %v582 = vld [vmem:[#allocation11 + $0x358] sm:$0xff]
    %v583 = vld [vmem:[#allocation11 + $0x360] sm:$0xff]
    %v584 = vld [vmem:[#allocation11 + $0x368] sm:$0xff]
    %v585 = vld [vmem:[#allocation11 + $0x370] sm:$0xff]
    %v586 = vld [vmem:[#allocation11 + $0x378] sm:$0xff]
    %v587 = vld [vmem:[#allocation11 + $0x380] sm:$0xff]
    %v588 = vld [vmem:[#allocation11 + $0x388] sm:$0xff]
    %v589 = vld [vmem:[#allocation11 + $0x390] sm:$0xff]
    %v590 = vld [vmem:[#allocation11 + $0x398] sm:$0xff]
    %v591 = vld [vmem:[#allocation11 + $0x3a0] sm:$0xff]
    %v592 = vld [vmem:[#allocation11 + $0x3a8] sm:$0xff]
    %v593 = vld [vmem:[#allocation11 + $0x3b0] sm:$0xff]
    %v594 = vld [vmem:[#allocation11 + $0x3b8] sm:$0xff]
    %v595 = vld [vmem:[#allocation11 + $0x3c0] sm:$0xff]
    %v596 = vld [vmem:[#allocation11 + $0x3c8] sm:$0xff]
    %v597 = vld [vmem:[#allocation11 + $0x3d0] sm:$0xff]
    %v598 = vld [vmem:[#allocation11 + $0x3d8] sm:$0xff]
    %v599 = vld [vmem:[#allocation11 + $0x3e0] sm:$0xff]
    %v600 = vld [vmem:[#allocation11 + $0x3e8] sm:$0xff]
    %v601 = vld [vmem:[#allocation11 + $0x3f0] sm:$0xff]
    %v602 = vld [vmem:[#allocation11 + $0x3f8] sm:$0xff]
    %v603 = vld [vmem:[%s9] sm:$0x1]
    %v605 = vlaneseq
    %v606 = vshrl.u32 %v605, 7
    %v607 = vsub.s32 0, %v606
    %v608 = vrot.slane %v474, %v607
    %v609 = vlaneseq
    %v610 = vshrl.u32 %v609, 7
    %v611 = vsub.s32 1, %v610
    %v612 = vrot.slane %v474, %v611
    %v613 = vlaneseq
    %v614 = vshrl.u32 %v613, 7
    %v615 = vsub.s32 2, %v614
    %v616 = vrot.slane %v474, %v615
    %v617 = vlaneseq
    %v618 = vshrl.u32 %v617, 7
    %v619 = vsub.s32 3, %v618
    %v620 = vrot.slane %v474, %v619
    %v621 = vlaneseq
    %v622 = vshrl.u32 %v621, 7
    %v623 = vsub.s32 4, %v622
    %v624 = vrot.slane %v474, %v623
    %v625 = vlaneseq
    %v626 = vshrl.u32 %v625, 7
    %v627 = vsub.s32 5, %v626
    %v628 = vrot.slane %v474, %v627
    %v629 = vlaneseq
    %v630 = vshrl.u32 %v629, 7
    %v631 = vsub.s32 6, %v630
    %v632 = vrot.slane %v474, %v631
    %v633 = vlaneseq
    %v634 = vshrl.u32 %v633, 7
    %v635 = vsub.s32 7, %v634
    %v636 = vrot.slane %v474, %v635
    %645 = vmatprep.subr.mxu0 0.0
    %646 = vmatpush1.msra.mxu0 %v475
    %647 = vmatprep.subr.mxu0 0.0
    %648 = vmatpush1.msra.mxu0 %v476
    %649 = vmatprep.subr.mxu0 0.0
    %650 = vmatpush1.msra.mxu0 %v477
    %651 = vmatprep.subr.mxu0 0.0
    %652 = vmatpush1.msra.mxu0 %v478
    %653 = vmatprep.subr.mxu0 0.0
    %654 = vmatpush1.msra.mxu0 %v479
    %655 = vmatprep.subr.mxu0 0.0
    %656 = vmatpush1.msra.mxu0 %v480
    %657 = vmatprep.subr.mxu0 0.0
    %658 = vmatpush1.msra.mxu0 %v481
    %659 = vmatprep.subr.mxu0 0.0
    %660 = vmatpush1.msra.mxu0 %v482
    %661 = vmatprep.subr.mxu0 0.0
    %662 = vmatpush1.msra.mxu0 %v483
    %663 = vmatprep.subr.mxu0 0.0
    %664 = vmatpush1.msra.mxu0 %v484
    %665 = vmatprep.subr.mxu0 0.0
    %666 = vmatpush1.msra.mxu0 %v485
    %667 = vmatprep.subr.mxu0 0.0
    %668 = vmatpush1.msra.mxu0 %v486
    %669 = vmatprep.subr.mxu0 0.0
    %670 = vmatpush1.msra.mxu0 %v487
    %671 = vmatprep.subr.mxu0 0.0
    %672 = vmatpush1.msra.mxu0 %v488
    %673 = vmatprep.subr.mxu0 0.0
    %674 = vmatpush1.msra.mxu0 %v489
    %675 = vmatprep.subr.mxu0 0.0
    %676 = vmatpush1.msra.mxu0 %v490
    %677 = vmatprep.subr.mxu0 0.0
    %678 = vmatpush1.msra.mxu0 %v491
    %679 = vmatprep.subr.mxu0 0.0
    %680 = vmatpush1.msra.mxu0 %v492
    %681 = vmatprep.subr.mxu0 0.0
    %682 = vmatpush1.msra.mxu0 %v493
    %683 = vmatprep.subr.mxu0 0.0
    %684 = vmatpush1.msra.mxu0 %v494
    %685 = vmatprep.subr.mxu0 0.0
    %686 = vmatpush1.msra.mxu0 %v495
    %687 = vmatprep.subr.mxu0 0.0
    %688 = vmatpush1.msra.mxu0 %v496
    %689 = vmatprep.subr.mxu0 0.0
    %690 = vmatpush1.msra.mxu0 %v497
    %691 = vmatprep.subr.mxu0 0.0
    %692 = vmatpush1.msra.mxu0 %v498
    %693 = vmatprep.subr.mxu0 0.0
    %694 = vmatpush1.msra.mxu0 %v499
    %695 = vmatprep.subr.mxu0 0.0
    %696 = vmatpush1.msra.mxu0 %v500
    %697 = vmatprep.subr.mxu0 0.0
    %698 = vmatpush1.msra.mxu0 %v501
    %699 = vmatprep.subr.mxu0 0.0
    %700 = vmatpush1.msra.mxu0 %v502
    %701 = vmatprep.subr.mxu0 0.0
    %702 = vmatpush1.msra.mxu0 %v503
    %703 = vmatprep.subr.mxu0 0.0
    %704 = vmatpush1.msra.mxu0 %v504
    %705 = vmatprep.subr.mxu0 0.0
    %706 = vmatpush1.msra.mxu0 %v505
    %707 = vmatprep.subr.mxu0 0.0
    %708 = vmatpush1.msra.mxu0 %v506
    %709 = vmatprep.mubr.f32.mxu0 %v612
    %710 = vmatmul.mubr.f32.gmra.mrb[0].mxu0 %v608
    %v711 = vpop.f32.mrb[0].mxu0
    %v712 = vadd.f32 %v603, %v711
    %v713 = vpop.f32.mrb[0].mxu0
    %714 = vdwg.mxu0
    %715 = vmatprep.subr.mxu0 0.0
    %716 = vmatpush1.msra.mxu0 %v507
    %717 = vmatprep.subr.mxu0 0.0
    %718 = vmatpush1.msra.mxu0 %v508
    %719 = vmatprep.subr.mxu0 0.0
    %720 = vmatpush1.msra.mxu0 %v509
    %721 = vmatprep.subr.mxu0 0.0
    %722 = vmatpush1.msra.mxu0 %v510
    %723 = vmatprep.subr.mxu0 0.0
    %724 = vmatpush1.msra.mxu0 %v511
    %725 = vmatprep.subr.mxu0 0.0
    %726 = vmatpush1.msra.mxu0 %v512
    %727 = vmatprep.subr.mxu0 0.0
    %728 = vmatpush1.msra.mxu0 %v513
    %729 = vmatprep.subr.mxu0 0.0
    %730 = vmatpush1.msra.mxu0 %v514
    %731 = vmatprep.subr.mxu0 0.0
    %732 = vmatpush1.msra.mxu0 %v515
    %733 = vmatprep.subr.mxu0 0.0
    %734 = vmatpush1.msra.mxu0 %v516
    %735 = vmatprep.subr.mxu0 0.0
    %736 = vmatpush1.msra.mxu0 %v517
    %737 = vmatprep.subr.mxu0 0.0
    %738 = vmatpush1.msra.mxu0 %v518
    %739 = vmatprep.subr.mxu0 0.0
    %740 = vmatpush1.msra.mxu0 %v519
    %741 = vmatprep.subr.mxu0 0.0
    %742 = vmatpush1.msra.mxu0 %v520
    %743 = vmatprep.subr.mxu0 0.0
    %744 = vmatpush1.msra.mxu0 %v521
    %745 = vmatprep.subr.mxu0 0.0
    %746 = vmatpush1.msra.mxu0 %v522
    %747 = vmatprep.subr.mxu0 0.0
    %748 = vmatpush1.msra.mxu0 %v523
    %749 = vmatprep.subr.mxu0 0.0
    %750 = vmatpush1.msra.mxu0 %v524
    %751 = vmatprep.subr.mxu0 0.0
    %752 = vmatpush1.msra.mxu0 %v525
    %753 = vmatprep.subr.mxu0 0.0
    %754 = vmatpush1.msra.mxu0 %v526
    %755 = vmatprep.subr.mxu0 0.0
    %756 = vmatpush1.msra.mxu0 %v527
    %757 = vmatprep.subr.mxu0 0.0
    %758 = vmatpush1.msra.mxu0 %v528
    %759 = vmatprep.subr.mxu0 0.0
    %760 = vmatpush1.msra.mxu0 %v529
    %761 = vmatprep.subr.mxu0 0.0
    %762 = vmatpush1.msra.mxu0 %v530
    %763 = vmatprep.subr.mxu0 0.0
    %764 = vmatpush1.msra.mxu0 %v531
    %765 = vmatprep.subr.mxu0 0.0
    %766 = vmatpush1.msra.mxu0 %v532
    %767 = vmatprep.subr.mxu0 0.0
    %768 = vmatpush1.msra.mxu0 %v533
    %769 = vmatprep.subr.mxu0 0.0
    %770 = vmatpush1.msra.mxu0 %v534
    %771 = vmatprep.subr.mxu0 0.0
    %772 = vmatpush1.msra.mxu0 %v535
    %773 = vmatprep.subr.mxu0 0.0
    %774 = vmatpush1.msra.mxu0 %v536
    %775 = vmatprep.subr.mxu0 0.0
    %776 = vmatpush1.msra.mxu0 %v537
    %777 = vmatprep.subr.mxu0 0.0
    %778 = vmatpush1.msra.mxu0 %v538
    %779 = vmatprep.mubr.f32.mxu0 %v620
    %780 = vmatmul.mubr.f32.gmra.mrb[0].mxu0 %v616
    %v781 = vpop.f32.mrb[0].mxu0
    %v782 = vadd.f32 %v712, %v781
    %v783 = vpop.f32.mrb[0].mxu0
    %784 = vdwg.mxu0
    %785 = vmatprep.subr.mxu0 0.0
    %786 = vmatpush1.msra.mxu0 %v539
    %787 = vmatprep.subr.mxu0 0.0
    %788 = vmatpush1.msra.mxu0 %v540
    %789 = vmatprep.subr.mxu0 0.0
    %790 = vmatpush1.msra.mxu0 %v541
    %791 = vmatprep.subr.mxu0 0.0
    %792 = vmatpush1.msra.mxu0 %v542
    %793 = vmatprep.subr.mxu0 0.0
    %794 = vmatpush1.msra.mxu0 %v543
    %795 = vmatprep.subr.mxu0 0.0
    %796 = vmatpush1.msra.mxu0 %v544
    %797 = vmatprep.subr.mxu0 0.0
    %798 = vmatpush1.msra.mxu0 %v545
    %799 = vmatprep.subr.mxu0 0.0
    %800 = vmatpush1.msra.mxu0 %v546
    %801 = vmatprep.subr.mxu0 0.0
    %802 = vmatpush1.msra.mxu0 %v547
    %803 = vmatprep.subr.mxu0 0.0
    %804 = vmatpush1.msra.mxu0 %v548
    %805 = vmatprep.subr.mxu0 0.0
    %806 = vmatpush1.msra.mxu0 %v549
    %807 = vmatprep.subr.mxu0 0.0
    %808 = vmatpush1.msra.mxu0 %v550
    %809 = vmatprep.subr.mxu0 0.0
    %810 = vmatpush1.msra.mxu0 %v551
    %811 = vmatprep.subr.mxu0 0.0
    %812 = vmatpush1.msra.mxu0 %v552
    %813 = vmatprep.subr.mxu0 0.0
    %814 = vmatpush1.msra.mxu0 %v553
    %815 = vmatprep.subr.mxu0 0.0
    %816 = vmatpush1.msra.mxu0 %v554
    %817 = vmatprep.subr.mxu0 0.0
    %818 = vmatpush1.msra.mxu0 %v555
    %819 = vmatprep.subr.mxu0 0.0
    %820 = vmatpush1.msra.mxu0 %v556
    %821 = vmatprep.subr.mxu0 0.0
    %822 = vmatpush1.msra.mxu0 %v557
    %823 = vmatprep.subr.mxu0 0.0
    %824 = vmatpush1.msra.mxu0 %v558
    %825 = vmatprep.subr.mxu0 0.0
    %826 = vmatpush1.msra.mxu0 %v559
    %827 = vmatprep.subr.mxu0 0.0
    %828 = vmatpush1.msra.mxu0 %v560
    %829 = vmatprep.subr.mxu0 0.0
    %830 = vmatpush1.msra.mxu0 %v561
    %831 = vmatprep.subr.mxu0 0.0
    %832 = vmatpush1.msra.mxu0 %v562
    %833 = vmatprep.subr.mxu0 0.0
    %834 = vmatpush1.msra.mxu0 %v563
    %835 = vmatprep.subr.mxu0 0.0
    %836 = vmatpush1.msra.mxu0 %v564
    %837 = vmatprep.subr.mxu0 0.0
    %838 = vmatpush1.msra.mxu0 %v565
    %839 = vmatprep.subr.mxu0 0.0
    %840 = vmatpush1.msra.mxu0 %v566
    %841 = vmatprep.subr.mxu0 0.0
    %842 = vmatpush1.msra.mxu0 %v567
    %843 = vmatprep.subr.mxu0 0.0
    %844 = vmatpush1.msra.mxu0 %v568
    %845 = vmatprep.subr.mxu0 0.0
    %846 = vmatpush1.msra.mxu0 %v569
    %847 = vmatprep.subr.mxu0 0.0
    %848 = vmatpush1.msra.mxu0 %v570
    %849 = vmatprep.mubr.f32.mxu0 %v628
    %850 = vmatmul.mubr.f32.gmra.mrb[0].mxu0 %v624
    %v851 = vpop.f32.mrb[0].mxu0
    %v852 = vadd.f32 %v782, %v851
    %v853 = vpop.f32.mrb[0].mxu0
    %854 = vdwg.mxu0
    %855 = vmatprep.subr.mxu0 0.0
    %856 = vmatpush1.msra.mxu0 %v571
    %857 = vmatprep.subr.mxu0 0.0
    %858 = vmatpush1.msra.mxu0 %v572
    %859 = vmatprep.subr.mxu0 0.0
    %860 = vmatpush1.msra.mxu0 %v573
    %861 = vmatprep.subr.mxu0 0.0
    %862 = vmatpush1.msra.mxu0 %v574
    %863 = vmatprep.subr.mxu0 0.0
    %864 = vmatpush1.msra.mxu0 %v575
    %865 = vmatprep.subr.mxu0 0.0
    %866 = vmatpush1.msra.mxu0 %v576
    %867 = vmatprep.subr.mxu0 0.0
    %868 = vmatpush1.msra.mxu0 %v577
    %869 = vmatprep.subr.mxu0 0.0
    %870 = vmatpush1.msra.mxu0 %v578
    %871 = vmatprep.subr.mxu0 0.0
    %872 = vmatpush1.msra.mxu0 %v579
    %873 = vmatprep.subr.mxu0 0.0
    %874 = vmatpush1.msra.mxu0 %v580
    %875 = vmatprep.subr.mxu0 0.0
    %876 = vmatpush1.msra.mxu0 %v581
    %877 = vmatprep.subr.mxu0 0.0
    %878 = vmatpush1.msra.mxu0 %v582
    %879 = vmatprep.subr.mxu0 0.0
    %880 = vmatpush1.msra.mxu0 %v583
    %881 = vmatprep.subr.mxu0 0.0
    %882 = vmatpush1.msra.mxu0 %v584
    %883 = vmatprep.subr.mxu0 0.0
    %884 = vmatpush1.msra.mxu0 %v585
    %885 = vmatprep.subr.mxu0 0.0
    %886 = vmatpush1.msra.mxu0 %v586
    %887 = vmatprep.subr.mxu0 0.0
    %888 = vmatpush1.msra.mxu0 %v587
    %889 = vmatprep.subr.mxu0 0.0
    %890 = vmatpush1.msra.mxu0 %v588
    %891 = vmatprep.subr.mxu0 0.0
    %892 = vmatpush1.msra.mxu0 %v589
    %893 = vmatprep.subr.mxu0 0.0
    %894 = vmatpush1.msra.mxu0 %v590
    %895 = vmatprep.subr.mxu0 0.0
    %896 = vmatpush1.msra.mxu0 %v591
    %897 = vmatprep.subr.mxu0 0.0
    %898 = vmatpush1.msra.mxu0 %v592
    %899 = vmatprep.subr.mxu0 0.0
    %900 = vmatpush1.msra.mxu0 %v593
    %901 = vmatprep.subr.mxu0 0.0
    %902 = vmatpush1.msra.mxu0 %v594
    %903 = vmatprep.subr.mxu0 0.0
    %904 = vmatpush1.msra.mxu0 %v595
    %905 = vmatprep.subr.mxu0 0.0
    %906 = vmatpush1.msra.mxu0 %v596
    %907 = vmatprep.subr.mxu0 0.0
    %908 = vmatpush1.msra.mxu0 %v597
    %909 = vmatprep.subr.mxu0 0.0
    %910 = vmatpush1.msra.mxu0 %v598
    %911 = vmatprep.subr.mxu0 0.0
    %912 = vmatpush1.msra.mxu0 %v599
    %913 = vmatprep.subr.mxu0 0.0
    %914 = vmatpush1.msra.mxu0 %v600
    %915 = vmatprep.subr.mxu0 0.0
    %916 = vmatpush1.msra.mxu0 %v601
    %917 = vmatprep.subr.mxu0 0.0
    %918 = vmatpush1.msra.mxu0 %v602
    %919 = vmatprep.mubr.f32.mxu0 %v636
    %920 = vmatmul.mubr.f32.gmra.mrb[0].mxu0 %v632
    %v921 = vpop.f32.mrb[0].mxu0
    %v922 = vadd.f32 %v852, %v921
    %v923 = vpop.f32.mrb[0].mxu0
    %924 = vdwg.mxu0
    %v925 = vmax.f32 %v922, 0.0
    %v926 = vld [vmem:[#allocation13] sm:$0xff]
    %v927 = vld [vmem:[#allocation13 + $0x8] sm:$0xff]
    %v928 = vld [vmem:[#allocation13 + $0x10] sm:$0xff]
    %v929 = vld [vmem:[#allocation13 + $0x18] sm:$0xff]
    %v930 = vld [vmem:[#allocation13 + $0x20] sm:$0xff]
    %v931 = vld [vmem:[#allocation13 + $0x28] sm:$0xff]
    %v932 = vld [vmem:[#allocation13 + $0x30] sm:$0xff]
    %v933 = vld [vmem:[#allocation13 + $0x38] sm:$0xff]
    %v934 = vld [vmem:[#allocation13 + $0x40] sm:$0xff]
    %v935 = vld [vmem:[#allocation13 + $0x48] sm:$0xff]
    %v936 = vld [vmem:[#allocation13 + $0x50] sm:$0xff]
    %v937 = vld [vmem:[#allocation13 + $0x58] sm:$0xff]
    %v938 = vld [vmem:[#allocation13 + $0x60] sm:$0xff]
    %v939 = vld [vmem:[#allocation13 + $0x68] sm:$0xff]
    %v940 = vld [vmem:[#allocation13 + $0x70] sm:$0xff]
    %v941 = vld [vmem:[#allocation13 + $0x78] sm:$0xff]
    %v942 = vld [vmem:[%s11] sm:$0x1]
    %943 = vmatprep.subr.mxu0 0.0
    %944 = vmatpush1.msra.mxu0 %v926
    %945 = vmatprep.subr.mxu0 0.0
    %946 = vmatpush1.msra.mxu0 %v927
    %947 = vmatprep.subr.mxu0 0.0
    %948 = vmatpush1.msra.mxu0 %v928
    %949 = vmatprep.subr.mxu0 0.0
    %950 = vmatpush1.msra.mxu0 %v929
    %951 = vmatprep.subr.mxu0 0.0
    %952 = vmatpush1.msra.mxu0 %v930
    %953 = vmatprep.subr.mxu0 0.0
    %954 = vmatpush1.msra.mxu0 %v931
    %955 = vmatprep.subr.mxu0 0.0
    %956 = vmatpush1.msra.mxu0 %v932
    %957 = vmatprep.subr.mxu0 0.0
    %958 = vmatpush1.msra.mxu0 %v933
    %959 = vmatprep.subr.mxu0 0.0
    %960 = vmatpush1.msra.mxu0 %v934
    %961 = vmatprep.subr.mxu0 0.0
    %962 = vmatpush1.msra.mxu0 %v935
    %963 = vmatprep.subr.mxu0 0.0
    %964 = vmatpush1.msra.mxu0 %v936
    %965 = vmatprep.subr.mxu0 0.0
    %966 = vmatpush1.msra.mxu0 %v937
    %967 = vmatprep.subr.mxu0 0.0
    %968 = vmatpush1.msra.mxu0 %v938
    %969 = vmatprep.subr.mxu0 0.0
    %970 = vmatpush1.msra.mxu0 %v939
    %971 = vmatprep.subr.mxu0 0.0
    %972 = vmatpush1.msra.mxu0 %v940
    %973 = vmatprep.subr.mxu0 0.0
    %974 = vmatpush1.msra.mxu0 %v941
    %975 = vmatprep.subr.mxu0 0.0
    %976 = vmatpush1.msra.mxu0 0.0
    %977 = vmatprep.subr.mxu0 0.0
    %978 = vmatpush1.msra.mxu0 0.0
    %979 = vmatprep.subr.mxu0 0.0
    %980 = vmatpush1.msra.mxu0 0.0
    %981 = vmatprep.subr.mxu0 0.0
    %982 = vmatpush1.msra.mxu0 0.0
    %983 = vmatprep.subr.mxu0 0.0
    %984 = vmatpush1.msra.mxu0 0.0
    %985 = vmatprep.subr.mxu0 0.0
    %986 = vmatpush1.msra.mxu0 0.0
    %987 = vmatprep.subr.mxu0 0.0
    %988 = vmatpush1.msra.mxu0 0.0
    %989 = vmatprep.subr.mxu0 0.0
    %990 = vmatpush1.msra.mxu0 0.0
    %991 = vmatprep.subr.mxu0 0.0
    %992 = vmatpush1.msra.mxu0 0.0
    %993 = vmatprep.subr.mxu0 0.0
    %994 = vmatpush1.msra.mxu0 0.0
    %995 = vmatprep.subr.mxu0 0.0
    %996 = vmatpush1.msra.mxu0 0.0
    %997 = vmatprep.subr.mxu0 0.0
    %998 = vmatpush1.msra.mxu0 0.0
    %999 = vmatprep.subr.mxu0 0.0
    %1000 = vmatpush1.msra.mxu0 0.0
    %1001 = vmatprep.subr.mxu0 0.0
    %1002 = vmatpush1.msra.mxu0 0.0
    %1003 = vmatprep.subr.mxu0 0.0
    %1004 = vmatpush1.msra.mxu0 0.0
    %1005 = vmatprep.subr.mxu0 0.0
    %1006 = vmatpush1.msra.mxu0 0.0
    %1007 = vmatprep.mubr.f32.mxu0 0.0
    %1008 = vmatmul.mubr.f32.gmra.mrb[0].mxu0 %v925
    %v1009 = vpop.f32.mrb[0].mxu0
    %v1010 = vadd.f32 %v942, %v1009
    %v1011 = vpop.f32.mrb[0].mxu0
    %1012 = vdwg.mxu0
    %v1014 = vrot.slane %v471, 7
    %vm1016 = vcmask 1040384
    %v1017 = vsel %vm1016, %v1010, %v1014
    %v1018 = vld [vmem:[#allocation14] sm:$0xff]
    %v1019 = vld [vmem:[#allocation14 + $0x8] sm:$0xff]
    %v1020 = vld [vmem:[#allocation14 + $0x10] sm:$0xff]
    %v1021 = vld [vmem:[#allocation14 + $0x18] sm:$0xff]
    %v1022 = vld [vmem:[#allocation14 + $0x20] sm:$0xff]
    %v1023 = vld [vmem:[#allocation14 + $0x28] sm:$0xff]
    %v1024 = vld [vmem:[#allocation14 + $0x30] sm:$0xff]
    %v1025 = vld [vmem:[#allocation14 + $0x38] sm:$0xff]
    %v1026 = vld [vmem:[#allocation14 + $0x40] sm:$0xff]
    %v1027 = vld [vmem:[#allocation14 + $0x48] sm:$0xff]
    %v1028 = vld [vmem:[#allocation14 + $0x50] sm:$0xff]
    %v1029 = vld [vmem:[#allocation14 + $0x58] sm:$0xff]
    %v1030 = vld [vmem:[#allocation14 + $0x60] sm:$0xff]
    %v1031 = vld [vmem:[#allocation14 + $0x68] sm:$0xff]
    %v1032 = vld [vmem:[#allocation14 + $0x70] sm:$0xff]
    %v1033 = vld [vmem:[#allocation14 + $0x78] sm:$0xff]
    %v1034 = vld [vmem:[#allocation14 + $0x80] sm:$0xff]
    %v1035 = vld [vmem:[#allocation14 + $0x88] sm:$0xff]
    %v1036 = vld [vmem:[#allocation14 + $0x90] sm:$0xff]
    %v1037 = vld [vmem:[#allocation14 + $0x98] sm:$0xff]
    %v1038 = vld [vmem:[#allocation14 + $0xa0] sm:$0xff]
    %v1039 = vld [vmem:[#allocation14 + $0xa8] sm:$0xff]
    %v1040 = vld [vmem:[#allocation14 + $0xb0] sm:$0xff]
    %v1041 = vld [vmem:[#allocation14 + $0xb8] sm:$0xff]
    %v1042 = vld [vmem:[#allocation14 + $0xc0] sm:$0xff]
    %v1043 = vld [vmem:[#allocation14 + $0xc8] sm:$0xff]
    %v1044 = vld [vmem:[#allocation14 + $0xd0] sm:$0xff]
    %v1045 = vld [vmem:[#allocation14 + $0xd8] sm:$0xff]
    %v1046 = vld [vmem:[#allocation14 + $0xe0] sm:$0xff]
    %v1047 = vld [vmem:[#allocation14 + $0xe8] sm:$0xff]
    %v1048 = vld [vmem:[#allocation14 + $0xf0] sm:$0xff]
    %v1049 = vld [vmem:[#allocation14 + $0xf8] sm:$0xff]
    %v1050 = vld [vmem:[#allocation14 + $0x100] sm:$0xff]
    %v1051 = vld [vmem:[#allocation14 + $0x108] sm:$0xff]
    %v1052 = vld [vmem:[#allocation14 + $0x110] sm:$0xff]
    %v1053 = vld [vmem:[#allocation14 + $0x118] sm:$0xff]
    %v1054 = vld [vmem:[#allocation14 + $0x120] sm:$0xff]
    %v1055 = vld [vmem:[#allocation14 + $0x128] sm:$0xff]
    %v1056 = vld [vmem:[#allocation14 + $0x130] sm:$0xff]
    %v1057 = vld [vmem:[#allocation14 + $0x138] sm:$0xff]
    %v1058 = vld [vmem:[#allocation14 + $0x140] sm:$0xff]
    %v1059 = vld [vmem:[#allocation14 + $0x148] sm:$0xff]
    %v1060 = vld [vmem:[#allocation14 + $0x150] sm:$0xff]
    %v1061 = vld [vmem:[#allocation14 + $0x158] sm:$0xff]
    %v1062 = vld [vmem:[#allocation14 + $0x160] sm:$0xff]
    %v1063 = vld [vmem:[#allocation14 + $0x168] sm:$0xff]
    %v1064 = vld [vmem:[#allocation14 + $0x170] sm:$0xff]
    %v1065 = vld [vmem:[#allocation14 + $0x178] sm:$0xff]
    %v1066 = vld [vmem:[%s13] sm:$0x7]
    %v1068 = vlaneseq
    %v1069 = vshrl.u32 %v1068, 7
    %v1070 = vsub.s32 0, %v1069
    %v1071 = vrot.slane %v1066, %v1070
    %v1072 = vlaneseq
    %v1073 = vshrl.u32 %v1072, 7
    %v1074 = vsub.s32 1, %v1073
    %v1075 = vrot.slane %v1066, %v1074
    %v1076 = vlaneseq
    %v1077 = vshrl.u32 %v1076, 7
    %v1078 = vsub.s32 2, %v1077
    %v1079 = vrot.slane %v1066, %v1078
    %1083 = vmatprep.subr.mxu0 %v1019
    %1084 = vmatpush1.msra.mxu0 %v1018
    %1085 = vmatprep.subr.mxu0 %v1022
    %1086 = vmatpush1.msra.mxu0 %v1021
    %1087 = vmatprep.subr.mxu0 %v1025
    %1088 = vmatpush1.msra.mxu0 %v1024
    %1089 = vmatprep.subr.mxu0 %v1028
    %1090 = vmatpush1.msra.mxu0 %v1027
    %1091 = vmatprep.subr.mxu0 %v1031
    %1092 = vmatpush1.msra.mxu0 %v1030
    %1093 = vmatprep.subr.mxu0 %v1034
    %1094 = vmatpush1.msra.mxu0 %v1033
    %1095 = vmatprep.subr.mxu0 %v1037
    %1096 = vmatpush1.msra.mxu0 %v1036
    %1097 = vmatprep.subr.mxu0 %v1040
    %1098 = vmatpush1.msra.mxu0 %v1039
    %1099 = vmatprep.subr.mxu0 %v1043
    %1100 = vmatpush1.msra.mxu0 %v1042
    %1101 = vmatprep.subr.mxu0 %v1046
    %1102 = vmatpush1.msra.mxu0 %v1045
    %1103 = vmatprep.subr.mxu0 %v1049
    %1104 = vmatpush1.msra.mxu0 %v1048
    %1105 = vmatprep.subr.mxu0 %v1052
    %1106 = vmatpush1.msra.mxu0 %v1051
    %1107 = vmatprep.subr.mxu0 %v1055
    %1108 = vmatpush1.msra.mxu0 %v1054
    %1109 = vmatprep.subr.mxu0 %v1058
    %1110 = vmatpush1.msra.mxu0 %v1057
    %1111 = vmatprep.subr.mxu0 %v1061
    %1112 = vmatpush1.msra.mxu0 %v1060
    %1113 = vmatprep.subr.mxu0 %v1064
    %1114 = vmatpush1.msra.mxu0 %v1063
    %1115 = vmatprep.subr.mxu0 0.0
    %1116 = vmatpush1.msra.mxu0 0.0
    %1117 = vmatprep.subr.mxu0 0.0
    %1118 = vmatpush1.msra.mxu0 0.0
    %1119 = vmatprep.subr.mxu0 0.0
    %1120 = vmatpush1.msra.mxu0 0.0
    %1121 = vmatprep.subr.mxu0 0.0
    %1122 = vmatpush1.msra.mxu0 0.0
    %1123 = vmatprep.subr.mxu0 0.0
    %1124 = vmatpush1.msra.mxu0 0.0
    %1125 = vmatprep.subr.mxu0 0.0
    %1126 = vmatpush1.msra.mxu0 0.0
    %1127 = vmatprep.subr.mxu0 0.0
    %1128 = vmatpush1.msra.mxu0 0.0
    %1129 = vmatprep.subr.mxu0 0.0
    %1130 = vmatpush1.msra.mxu0 0.0
    %1131 = vmatprep.subr.mxu0 0.0
    %1132 = vmatpush1.msra.mxu0 0.0
    %1133 = vmatprep.subr.mxu0 0.0
    %1134 = vmatpush1.msra.mxu0 0.0
    %1135 = vmatprep.subr.mxu0 0.0
    %1136 = vmatpush1.msra.mxu0 0.0
    %1137 = vmatprep.subr.mxu0 0.0
    %1138 = vmatpush1.msra.mxu0 0.0
    %1139 = vmatprep.subr.mxu0 0.0
    %1140 = vmatpush1.msra.mxu0 0.0
    %1141 = vmatprep.subr.mxu0 0.0
    %1142 = vmatpush1.msra.mxu0 0.0
    %1143 = vmatprep.subr.mxu0 0.0
    %1144 = vmatpush1.msra.mxu0 0.0
    %1145 = vmatprep.subr.mxu0 0.0
    %1146 = vmatpush1.msra.mxu0 0.0
    %1147 = vmatprep.mubr.f32.mxu0 0.0
    %1148 = vmatmul.mubr.f32.gmra.mrb[0].mxu0 %v1017
    %v1149 = vpop.f32.mrb[0].mxu0
    %v1150 = vadd.f32 %v1071, %v1149
    %v1151 = vpop.f32.mrb[0].mxu0
    %v1152 = vadd.f32 %v1075, %v1151
    %1153 = vdwg.mxu0
    %1154 = vmatprep.subr.mxu0 0.0
    %1155 = vmatpush1.msra.mxu0 %v1020
    %1156 = vmatprep.subr.mxu0 0.0
    %1157 = vmatpush1.msra.mxu0 %v1023
    %1158 = vmatprep.subr.mxu0 0.0
    %1159 = vmatpush1.msra.mxu0 %v1026
    %1160 = vmatprep.subr.mxu0 0.0
    %1161 = vmatpush1.msra.mxu0 %v1029
    %1162 = vmatprep.subr.mxu0 0.0
    %1163 = vmatpush1.msra.mxu0 %v1032
    %1164 = vmatprep.subr.mxu0 0.0
    %1165 = vmatpush1.msra.mxu0 %v1035
    %1166 = vmatprep.subr.mxu0 0.0
    %1167 = vmatpush1.msra.mxu0 %v1038
    %1168 = vmatprep.subr.mxu0 0.0
    %1169 = vmatpush1.msra.mxu0 %v1041
    %1170 = vmatprep.subr.mxu0 0.0
    %1171 = vmatpush1.msra.mxu0 %v1044
    %1172 = vmatprep.subr.mxu0 0.0
    %1173 = vmatpush1.msra.mxu0 %v1047
    %1174 = vmatprep.subr.mxu0 0.0
    %1175 = vmatpush1.msra.mxu0 %v1050
    %1176 = vmatprep.subr.mxu0 0.0
    %1177 = vmatpush1.msra.mxu0 %v1053
    %1178 = vmatprep.subr.mxu0 0.0
    %1179 = vmatpush1.msra.mxu0 %v1056
    %1180 = vmatprep.subr.mxu0 0.0
    %1181 = vmatpush1.msra.mxu0 %v1059
    %1182 = vmatprep.subr.mxu0 0.0
    %1183 = vmatpush1.msra.mxu0 %v1062
    %1184 = vmatprep.subr.mxu0 0.0
    %1185 = vmatpush1.msra.mxu0 %v1065
    %1186 = vmatprep.subr.mxu0 0.0
    %1187 = vmatpush1.msra.mxu0 0.0
    %1188 = vmatprep.subr.mxu0 0.0
    %1189 = vmatpush1.msra.mxu0 0.0
    %1190 = vmatprep.subr.mxu0 0.0
    %1191 = vmatpush1.msra.mxu0 0.0
    %1192 = vmatprep.subr.mxu0 0.0
    %1193 = vmatpush1.msra.mxu0 0.0
    %1194 = vmatprep.subr.mxu0 0.0
    %1195 = vmatpush1.msra.mxu0 0.0
    %1196 = vmatprep.subr.mxu0 0.0
    %1197 = vmatpush1.msra.mxu0 0.0
    %1198 = vmatprep.subr.mxu0 0.0
    %1199 = vmatpush1.msra.mxu0 0.0
    %1200 = vmatprep.subr.mxu0 0.0
    %1201 = vmatpush1.msra.mxu0 0.0
    %1202 = vmatprep.subr.mxu0 0.0
    %1203 = vmatpush1.msra.mxu0 0.0
    %1204 = vmatprep.subr.mxu0 0.0
    %1205 = vmatpush1.msra.mxu0 0.0
    %1206 = vmatprep.subr.mxu0 0.0
    %1207 = vmatpush1.msra.mxu0 0.0
    %1208 = vmatprep.subr.mxu0 0.0
    %1209 = vmatpush1.msra.mxu0 0.0
    %1210 = vmatprep.subr.mxu0 0.0
    %1211 = vmatpush1.msra.mxu0 0.0
    %1212 = vmatprep.subr.mxu0 0.0
    %1213 = vmatpush1.msra.mxu0 0.0
    %1214 = vmatprep.subr.mxu0 0.0
    %1215 = vmatpush1.msra.mxu0 0.0
    %1216 = vmatprep.subr.mxu0 0.0
    %1217 = vmatpush1.msra.mxu0 0.0
    %1218 = vmatprep.mubr.f32.mxu0 0.0
    %1219 = vmatmul.mubr.f32.gmra.mrb[0].mxu0 %v1017
    %v1220 = vpop.f32.mrb[0].mxu0
    %v1221 = vadd.f32 %v1079, %v1220
    %v1222 = vpop.f32.mrb[0].mxu0
    %1223 = vdwg.mxu0
    %1225 = vrot.lane.b32.xlu0 %v1150, 64
    %v1226 = vpop.permute.xlu0 %1225
    %v1228 = vcombine.low %v1150, %v1226
    %v1230 = vunpack.c.l.s4 1934713408
    %v1231 = vunpack.c.0.s8 %v1230
    %v1232 = vlaneseq
    %v1233 = vshrl.u32 %v1232, 7
    %v1234 = vsub.s32 %v1231, %v1233
    %v1235 = vrot.slane %v1228, %v1234
    %v1237 = vunpack.c.l.s4 1934713408
    %v1238 = vunpack.c.0.s8 %v1237
    %v1239 = vlaneseq
    %v1240 = vshrl.u32 %v1239, 7
    %v1241 = vsub.s32 %v1238, %v1240
    %v1242 = vrot.slane %v1235, %v1241
    %v1243 = vcombine.high %v1242, 0.0
    %1245 = vrot.lane.b32.xlu0 %v1152, 64
    %v1246 = vpop.permute.xlu0 %1245
    %v1247 = vrot.slane %v1152, 1
    %v1248 = vrot.slane %v1246, 1
    %v1251 = vcombine.low %v1247, %v1248
    %v1253 = vunpack.c.l.s4 1934713408
    %v1254 = vunpack.c.0.s8 %v1253
    %v1255 = vlaneseq
    %v1256 = vshrl.u32 %v1255, 7
    %v1257 = vsub.s32 %v1254, %v1256
    %v1258 = vrot.slane %v1251, %v1257
    %v1259 = vcombine.high %v1258, 0.0
    %v1260 = vcombine.low %v1258, %v1259
    %v1262 = vunpack.c.l.s4 1934713408
    %v1263 = vunpack.c.0.s8 %v1262
    %v1264 = vlaneseq
    %v1265 = vshrl.u32 %v1264, 7
    %v1266 = vsub.s32 %v1263, %v1265
    %v1267 = vrot.slane %v1260, %v1266
    %v1268 = vcombine.high %v1267, 0.0
    %1270 = vrot.lane.b32.xlu0 %v1221, 64
    %v1271 = vpop.permute.xlu0 %1270
    %v1272 = vrot.slane %v1221, 1
    %v1273 = vrot.slane %v1271, 1
    %v1276 = vcombine.low %v1272, %v1273
    %v1278 = vunpack.c.l.s4 1934713408
    %v1279 = vunpack.c.0.s8 %v1278
    %v1280 = vlaneseq
    %v1281 = vshrl.u32 %v1280, 7
    %v1282 = vsub.s32 %v1279, %v1281
    %v1283 = vrot.slane %v1276, %v1282
    %v1284 = vcombine.high %v1283, 0.0
    %v1285 = vcombine.low %v1283, %v1284
    %v1287 = vunpack.c.l.s4 1934713408
    %v1288 = vunpack.c.0.s8 %v1287
    %v1289 = vlaneseq
    %v1290 = vshrl.u32 %v1289, 7
    %v1291 = vsub.s32 %v1288, %v1290
    %v1292 = vrot.slane %v1285, %v1291
    %v1293 = vcombine.high %v1292, 0.0
    %vm1294 = vcmask 523264
    %v1296 = vsel %vm1294, %v1242, 0
    %v1299 = vsel %vm1294, %v1267, 0
    %1301 = vmatprep.subr.mxu0 0.0
    %1302 = vmatpush1.xpose.msra.mxu0 %v1299
    %1303 = vmatprep.subr.mxu0 0.0
    %1304 = vmatpush1.xpose.msra.mxu0 0.0
    %1305 = vmatprep.subr.mxu0 0.0
    %1306 = vmatpush1.xpose.msra.mxu0 0.0
    %1307 = vmatprep.subr.mxu0 0.0
    %1308 = vmatpush1.xpose.msra.mxu0 0.0
    %1309 = vmatprep.subr.mxu0 0.0
    %1310 = vmatpush1.xpose.msra.mxu0 0.0
    %1311 = vmatprep.subr.mxu0 0.0
    %1312 = vmatpush1.xpose.msra.mxu0 0.0
    %1313 = vmatprep.subr.mxu0 0.0
    %1314 = vmatpush1.xpose.msra.mxu0 0.0
    %1315 = vmatprep.subr.mxu0 0.0
    %1316 = vmatpush1.xpose.msra.mxu0 0.0
    %1317 = vmatprep.subr.mxu0 0.0
    %1318 = vmatpush1.xpose.msra.mxu0 0.0
    %1319 = vmatprep.subr.mxu0 0.0
    %1320 = vmatpush1.xpose.msra.mxu0 0.0
    %1321 = vmatprep.subr.mxu0 0.0
    %1322 = vmatpush1.xpose.msra.mxu0 0.0
    %1323 = vmatprep.subr.mxu0 0.0
    %1324 = vmatpush1.xpose.msra.mxu0 0.0
    %1325 = vmatprep.subr.mxu0 0.0
    %1326 = vmatpush1.xpose.msra.mxu0 0.0
    %1327 = vmatprep.subr.mxu0 0.0
    %1328 = vmatpush1.xpose.msra.mxu0 0.0
    %1329 = vmatprep.subr.mxu0 0.0
    %1330 = vmatpush1.xpose.msra.mxu0 0.0
    %1331 = vmatprep.subr.mxu0 0.0
    %1332 = vmatpush1.xpose.msra.mxu0 0.0
    %1333 = vmatprep.subr.mxu0 0.0
    %1334 = vmatpush1.xpose.msra.mxu0 0.0
    %1335 = vmatprep.subr.mxu0 0.0
    %1336 = vmatpush1.xpose.msra.mxu0 0.0
    %1337 = vmatprep.subr.mxu0 0.0
    %1338 = vmatpush1.xpose.msra.mxu0 0.0
    %1339 = vmatprep.subr.mxu0 0.0
    %1340 = vmatpush1.xpose.msra.mxu0 0.0
    %1341 = vmatprep.subr.mxu0 0.0
    %1342 = vmatpush1.xpose.msra.mxu0 0.0
    %1343 = vmatprep.subr.mxu0 0.0
    %1344 = vmatpush1.xpose.msra.mxu0 0.0
    %1345 = vmatprep.subr.mxu0 0.0
    %1346 = vmatpush1.xpose.msra.mxu0 0.0
    %1347 = vmatprep.subr.mxu0 0.0
    %1348 = vmatpush1.xpose.msra.mxu0 0.0
    %1349 = vmatprep.subr.mxu0 0.0
    %1350 = vmatpush1.xpose.msra.mxu0 0.0
    %1351 = vmatprep.subr.mxu0 0.0
    %1352 = vmatpush1.xpose.msra.mxu0 0.0
    %1353 = vmatprep.subr.mxu0 0.0
    %1354 = vmatpush1.xpose.msra.mxu0 0.0
    %1355 = vmatprep.subr.mxu0 0.0
    %1356 = vmatpush1.xpose.msra.mxu0 0.0
    %1357 = vmatprep.subr.mxu0 0.0
    %1358 = vmatpush1.xpose.msra.mxu0 0.0
    %1359 = vmatprep.subr.mxu0 0.0
    %1360 = vmatpush1.xpose.msra.mxu0 0.0
    %1361 = vmatprep.subr.mxu0 0.0
    %1362 = vmatpush1.xpose.msra.mxu0 0.0
    %1363 = vmatprep.subr.mxu0 0.0
    %1364 = vmatpush1.xpose.msra.mxu0 0.0
    %1365 = vmatprep.mubr.f32.mxu0 0.0
    %1366 = vmatmul.mubr.f32.gmra.mrb[0].mxu0 %v1296
    %v1367 = vpop.f32.mrb[0].mxu0
    %v1368 = vadd.f32 0.0, %v1367
    %v1369 = vpop.f32.mrb[0].mxu0
    %1370 = vdwg.mxu0
    %v1372 = vsel %vm1294, %v1243, 0
    %v1375 = vsel %vm1294, %v1268, 0
    %1377 = vmatprep.subr.mxu0 0.0
    %1378 = vmatpush1.xpose.msra.mxu0 %v1375
    %1379 = vmatprep.subr.mxu0 0.0
    %1380 = vmatpush1.xpose.msra.mxu0 0.0
    %1381 = vmatprep.subr.mxu0 0.0
    %1382 = vmatpush1.xpose.msra.mxu0 0.0
    %1383 = vmatprep.subr.mxu0 0.0
    %1384 = vmatpush1.xpose.msra.mxu0 0.0
    %1385 = vmatprep.subr.mxu0 0.0
    %1386 = vmatpush1.xpose.msra.mxu0 0.0
    %1387 = vmatprep.subr.mxu0 0.0
    %1388 = vmatpush1.xpose.msra.mxu0 0.0
    %1389 = vmatprep.subr.mxu0 0.0
    %1390 = vmatpush1.xpose.msra.mxu0 0.0
    %1391 = vmatprep.subr.mxu0 0.0
    %1392 = vmatpush1.xpose.msra.mxu0 0.0
    %1393 = vmatprep.subr.mxu0 0.0
    %1394 = vmatpush1.xpose.msra.mxu0 0.0
    %1395 = vmatprep.subr.mxu0 0.0
    %1396 = vmatpush1.xpose.msra.mxu0 0.0
    %1397 = vmatprep.subr.mxu0 0.0
    %1398 = vmatpush1.xpose.msra.mxu0 0.0
    %1399 = vmatprep.subr.mxu0 0.0
    %1400 = vmatpush1.xpose.msra.mxu0 0.0
    %1401 = vmatprep.subr.mxu0 0.0
    %1402 = vmatpush1.xpose.msra.mxu0 0.0
    %1403 = vmatprep.subr.mxu0 0.0
    %1404 = vmatpush1.xpose.msra.mxu0 0.0
    %1405 = vmatprep.subr.mxu0 0.0
    %1406 = vmatpush1.xpose.msra.mxu0 0.0
    %1407 = vmatprep.subr.mxu0 0.0
    %1408 = vmatpush1.xpose.msra.mxu0 0.0
    %1409 = vmatprep.subr.mxu0 0.0
    %1410 = vmatpush1.xpose.msra.mxu0 0.0
    %1411 = vmatprep.subr.mxu0 0.0
    %1412 = vmatpush1.xpose.msra.mxu0 0.0
    %1413 = vmatprep.subr.mxu0 0.0
    %1414 = vmatpush1.xpose.msra.mxu0 0.0
    %1415 = vmatprep.subr.mxu0 0.0
    %1416 = vmatpush1.xpose.msra.mxu0 0.0
    %1417 = vmatprep.subr.mxu0 0.0
    %1418 = vmatpush1.xpose.msra.mxu0 0.0
    %1419 = vmatprep.subr.mxu0 0.0
    %1420 = vmatpush1.xpose.msra.mxu0 0.0
    %1421 = vmatprep.subr.mxu0 0.0
    %1422 = vmatpush1.xpose.msra.mxu0 0.0
    %1423 = vmatprep.subr.mxu0 0.0
    %1424 = vmatpush1.xpose.msra.mxu0 0.0
    %1425 = vmatprep.subr.mxu0 0.0
    %1426 = vmatpush1.xpose.msra.mxu0 0.0
    %1427 = vmatprep.subr.mxu0 0.0
    %1428 = vmatpush1.xpose.msra.mxu0 0.0
    %1429 = vmatprep.subr.mxu0 0.0
    %1430 = vmatpush1.xpose.msra.mxu0 0.0
    %1431 = vmatprep.subr.mxu0 0.0
    %1432 = vmatpush1.xpose.msra.mxu0 0.0
    %1433 = vmatprep.subr.mxu0 0.0
    %1434 = vmatpush1.xpose.msra.mxu0 0.0
    %1435 = vmatprep.subr.mxu0 0.0
    %1436 = vmatpush1.xpose.msra.mxu0 0.0
    %1437 = vmatprep.subr.mxu0 0.0
    %1438 = vmatpush1.xpose.msra.mxu0 0.0
    %1439 = vmatprep.subr.mxu0 0.0
    %1440 = vmatpush1.xpose.msra.mxu0 0.0
    %1441 = vmatprep.mubr.f32.mxu0 0.0
    %1442 = vmatmul.mubr.f32.gmra.mrb[0].mxu0 %v1372
    %v1443 = vpop.f32.mrb[0].mxu0
    %v1444 = vadd.f32 0.0, %v1443
    %v1445 = vpop.f32.mrb[0].mxu0
    %1446 = vdwg.mxu0
    %vm1447 = vcmask 8192
    %v1448 = vsel %vm1447, %v1368, -inf
    %1449 = vmax.xlane.f32.xlu0 %v1448
    %v1450 = vpop.xlane.xlu0 %1449
    %v1451 = vsel %vm1447, %v1444, -inf
    %1452 = vmax.xlane.f32.xlu0 %v1451
    %v1453 = vpop.xlane.xlu0 %1452
    %v1454 = vsub.f32 %v1368, %v1450
    %v1455 = vsub.f32 %v1444, %v1453
    %v1456 = vmul.f32 %v1454, 1.442695
    %v1457 = vpow.pop %v1456
    %v1458 = vmul.f32 %v1455, 1.442695
    %v1459 = vpow.pop %v1458
    %v1460 = vsel %vm1447, %v1457, 0.0
    %1461 = vadd.xlane.f32.xlu0 %v1460
    %v1462 = vpop.xlane.xlu0 %1461
    %v1463 = vsel %vm1447, %v1459, 0.0
    %1464 = vadd.xlane.f32.xlu0 %v1463
    %v1465 = vpop.xlane.xlu0 %1464
    %v1466 = vrcp.pop %v1462
    %v1467 = vrcp.pop %v1465
    %v1468 = vmul.f32 %v1457, %v1466
    %v1469 = vmul.f32 %v1459, %v1467
    %vm1470 = vcmask 15360
    %v1472 = vsel %vm1470, %v1468, 0
    %vm1474 = vcmask 1041408
    %v1476 = vsel %vm1474, %v1292, 0
    %1478 = vmatprep.subr.mxu0 0.0
    %1479 = vmatpush1.msra.mxu0 %v1476
    %1480 = vmatprep.subr.mxu0 0.0
    %1481 = vmatpush1.msra.mxu0 0.0
    %1482 = vmatprep.subr.mxu0 0.0
    %1483 = vmatpush1.msra.mxu0 0.0
    %1484 = vmatprep.subr.mxu0 0.0
    %1485 = vmatpush1.msra.mxu0 0.0
    %1486 = vmatprep.subr.mxu0 0.0
    %1487 = vmatpush1.msra.mxu0 0.0
    %1488 = vmatprep.subr.mxu0 0.0
    %1489 = vmatpush1.msra.mxu0 0.0
    %1490 = vmatprep.subr.mxu0 0.0
    %1491 = vmatpush1.msra.mxu0 0.0
    %1492 = vmatprep.subr.mxu0 0.0
    %1493 = vmatpush1.msra.mxu0 0.0
    %1494 = vmatprep.subr.mxu0 0.0
    %1495 = vmatpush1.msra.mxu0 0.0
    %1496 = vmatprep.subr.mxu0 0.0
    %1497 = vmatpush1.msra.mxu0 0.0
    %1498 = vmatprep.subr.mxu0 0.0
    %1499 = vmatpush1.msra.mxu0 0.0
    %1500 = vmatprep.subr.mxu0 0.0
    %1501 = vmatpush1.msra.mxu0 0.0
    %1502 = vmatprep.subr.mxu0 0.0
    %1503 = vmatpush1.msra.mxu0 0.0
    %1504 = vmatprep.subr.mxu0 0.0
    %1505 = vmatpush1.msra.mxu0 0.0
    %1506 = vmatprep.subr.mxu0 0.0
    %1507 = vmatpush1.msra.mxu0 0.0
    %1508 = vmatprep.subr.mxu0 0.0
    %1509 = vmatpush1.msra.mxu0 0.0
    %1510 = vmatprep.subr.mxu0 0.0
    %1511 = vmatpush1.msra.mxu0 0.0
    %1512 = vmatprep.subr.mxu0 0.0
    %1513 = vmatpush1.msra.mxu0 0.0
    %1514 = vmatprep.subr.mxu0 0.0
    %1515 = vmatpush1.msra.mxu0 0.0
    %1516 = vmatprep.subr.mxu0 0.0
    %1517 = vmatpush1.msra.mxu0 0.0
    %1518 = vmatprep.subr.mxu0 0.0
    %1519 = vmatpush1.msra.mxu0 0.0
    %1520 = vmatprep.subr.mxu0 0.0
    %1521 = vmatpush1.msra.mxu0 0.0
    %1522 = vmatprep.subr.mxu0 0.0
    %1523 = vmatpush1.msra.mxu0 0.0
    %1524 = vmatprep.subr.mxu0 0.0
    %1525 = vmatpush1.msra.mxu0 0.0
    %1526 = vmatprep.subr.mxu0 0.0
    %1527 = vmatpush1.msra.mxu0 0.0
    %1528 = vmatprep.subr.mxu0 0.0
    %1529 = vmatpush1.msra.mxu0 0.0
    %1530 = vmatprep.subr.mxu0 0.0
    %1531 = vmatpush1.msra.mxu0 0.0
    %1532 = vmatprep.subr.mxu0 0.0
    %1533 = vmatpush1.msra.mxu0 0.0
    %1534 = vmatprep.subr.mxu0 0.0
    %1535 = vmatpush1.msra.mxu0 0.0
    %1536 = vmatprep.subr.mxu0 0.0
    %1537 = vmatpush1.msra.mxu0 0.0
    %1538 = vmatprep.subr.mxu0 0.0
    %1539 = vmatpush1.msra.mxu0 0.0
    %1540 = vmatprep.subr.mxu0 0.0
    %1541 = vmatpush1.msra.mxu0 0.0
    %1542 = vmatprep.mubr.f32.mxu0 0.0
    %1543 = vmatmul.mubr.f32.gmra.mrb[0].mxu0 %v1472
    %v1544 = vpop.f32.mrb[0].mxu0
    %v1545 = vadd.f32 0.0, %v1544
    %v1546 = vpop.f32.mrb[0].mxu0
    %1547 = vdwg.mxu0
    %v1549 = vsel %vm1470, %v1469, 0
    %v1552 = vsel %vm1474, %v1293, 0
    %1554 = vmatprep.subr.mxu0 0.0
    %1555 = vmatpush1.msra.mxu0 %v1552
    %1556 = vmatprep.subr.mxu0 0.0
    %1557 = vmatpush1.msra.mxu0 0.0
    %1558 = vmatprep.subr.mxu0 0.0
    %1559 = vmatpush1.msra.mxu0 0.0
    %1560 = vmatprep.subr.mxu0 0.0
    %1561 = vmatpush1.msra.mxu0 0.0
    %1562 = vmatprep.subr.mxu0 0.0
    %1563 = vmatpush1.msra.mxu0 0.0
    %1564 = vmatprep.subr.mxu0 0.0
    %1565 = vmatpush1.msra.mxu0 0.0
    %1566 = vmatprep.subr.mxu0 0.0
    %1567 = vmatpush1.msra.mxu0 0.0
    %1568 = vmatprep.subr.mxu0 0.0
    %1569 = vmatpush1.msra.mxu0 0.0
    %1570 = vmatprep.subr.mxu0 0.0
    %1571 = vmatpush1.msra.mxu0 0.0
    %1572 = vmatprep.subr.mxu0 0.0
    %1573 = vmatpush1.msra.mxu0 0.0
    %1574 = vmatprep.subr.mxu0 0.0
    %1575 = vmatpush1.msra.mxu0 0.0
    %1576 = vmatprep.subr.mxu0 0.0
    %1577 = vmatpush1.msra.mxu0 0.0
    %1578 = vmatprep.subr.mxu0 0.0
    %1579 = vmatpush1.msra.mxu0 0.0
    %1580 = vmatprep.subr.mxu0 0.0
    %1581 = vmatpush1.msra.mxu0 0.0
    %1582 = vmatprep.subr.mxu0 0.0
    %1583 = vmatpush1.msra.mxu0 0.0
    %1584 = vmatprep.subr.mxu0 0.0
    %1585 = vmatpush1.msra.mxu0 0.0
    %1586 = vmatprep.subr.mxu0 0.0
    %1587 = vmatpush1.msra.mxu0 0.0
    %1588 = vmatprep.subr.mxu0 0.0
    %1589 = vmatpush1.msra.mxu0 0.0
    %1590 = vmatprep.subr.mxu0 0.0
    %1591 = vmatpush1.msra.mxu0 0.0
    %1592 = vmatprep.subr.mxu0 0.0
    %1593 = vmatpush1.msra.mxu0 0.0
    %1594 = vmatprep.subr.mxu0 0.0
    %1595 = vmatpush1.msra.mxu0 0.0
    %1596 = vmatprep.subr.mxu0 0.0
    %1597 = vmatpush1.msra.mxu0 0.0
    %1598 = vmatprep.subr.mxu0 0.0
    %1599 = vmatpush1.msra.mxu0 0.0
    %1600 = vmatprep.subr.mxu0 0.0
    %1601 = vmatpush1.msra.mxu0 0.0
    %1602 = vmatprep.subr.mxu0 0.0
    %1603 = vmatpush1.msra.mxu0 0.0
    %1604 = vmatprep.subr.mxu0 0.0
    %1605 = vmatpush1.msra.mxu0 0.0
    %1606 = vmatprep.subr.mxu0 0.0
    %1607 = vmatpush1.msra.mxu0 0.0
    %1608 = vmatprep.subr.mxu0 0.0
    %1609 = vmatpush1.msra.mxu0 0.0
    %1610 = vmatprep.subr.mxu0 0.0
    %1611 = vmatpush1.msra.mxu0 0.0
    %1612 = vmatprep.subr.mxu0 0.0
    %1613 = vmatpush1.msra.mxu0 0.0
    %1614 = vmatprep.subr.mxu0 0.0
    %1615 = vmatpush1.msra.mxu0 0.0
    %1616 = vmatprep.subr.mxu0 0.0
    %1617 = vmatpush1.msra.mxu0 0.0
    %1618 = vmatprep.mubr.f32.mxu0 0.0
    %1619 = vmatmul.mubr.f32.gmra.mrb[0].mxu0 %v1549
    %v1620 = vpop.f32.mrb[0].mxu0
    %v1621 = vadd.f32 0.0, %v1620
    %v1622 = vpop.f32.mrb[0].mxu0
    %1623 = vdwg.mxu0
    %v1624 = vcombine.low %v1545, %v1621
    %v1626 = vunpack.c.l.s4 1934713408
    %v1627 = vunpack.c.0.s8 %v1626
    %v1628 = vlaneseq
    %v1629 = vshrl.u32 %v1628, 7
    %v1630 = vsub.s32 %v1627, %v1629
    %v1631 = vrot.slane %v1624, %v1630
    %v1633 = vunpack.c.l.s4 1934713408
    %v1634 = vunpack.c.0.s8 %v1633
    %v1635 = vlaneseq
    %v1636 = vshrl.u32 %v1635, 7
    %v1637 = vsub.s32 %v1634, %v1636
    %v1638 = vrot.slane %v1631, %v1637
    %v1639 = vcombine.high %v1638, 0.0
    %1641 = vrot.lane.b32.xlu0 %v1639, 64
    %v1642 = vpop.permute.xlu0 %1641
    %v1644 = vsel %vm1294, %v1638, %v1642
    %v1645 = vld [vmem:[#allocation16] sm:$0xff]
    %v1646 = vld [vmem:[#allocation16 + $0x8] sm:$0xff]
    %v1647 = vld [vmem:[#allocation16 + $0x10] sm:$0xff]
    %v1648 = vld [vmem:[#allocation16 + $0x18] sm:$0xff]
    %v1649 = vld [vmem:[#allocation16 + $0x20] sm:$0xff]
    %v1650 = vld [vmem:[#allocation16 + $0x28] sm:$0xff]
    %v1651 = vld [vmem:[#allocation16 + $0x30] sm:$0xff]
    %v1652 = vld [vmem:[#allocation16 + $0x38] sm:$0xff]
    %v1653 = vld [vmem:[#allocation16 + $0x40] sm:$0xff]
    %v1654 = vld [vmem:[#allocation16 + $0x48] sm:$0xff]
    %v1655 = vld [vmem:[#allocation16 + $0x50] sm:$0xff]
    %v1656 = vld [vmem:[#allocation16 + $0x58] sm:$0xff]
    %v1657 = vld [vmem:[#allocation16 + $0x60] sm:$0xff]
    %v1658 = vld [vmem:[#allocation16 + $0x68] sm:$0xff]
    %v1659 = vld [vmem:[#allocation16 + $0x70] sm:$0xff]
    %v1660 = vld [vmem:[#allocation16 + $0x78] sm:$0xff]
    %v1661 = vld [vmem:[%s15] sm:$0x1]
    %1662 = vmatprep.subr.mxu0 0.0
    %1663 = vmatpush1.msra.mxu0 %v1645
    %1664 = vmatprep.subr.mxu0 0.0
    %1665 = vmatpush1.msra.mxu0 %v1646
    %1666 = vmatprep.subr.mxu0 0.0
    %1667 = vmatpush1.msra.mxu0 %v1647
    %1668 = vmatprep.subr.mxu0 0.0
    %1669 = vmatpush1.msra.mxu0 %v1648
    %1670 = vmatprep.subr.mxu0 0.0
    %1671 = vmatpush1.msra.mxu0 %v1649
    %1672 = vmatprep.subr.mxu0 0.0
    %1673 = vmatpush1.msra.mxu0 %v1650
    %1674 = vmatprep.subr.mxu0 0.0
    %1675 = vmatpush1.msra.mxu0 %v1651
    %1676 = vmatprep.subr.mxu0 0.0
    %1677 = vmatpush1.msra.mxu0 %v1652
    %1678 = vmatprep.subr.mxu0 0.0
    %1679 = vmatpush1.msra.mxu0 %v1653
    %1680 = vmatprep.subr.mxu0 0.0
    %1681 = vmatpush1.msra.mxu0 %v1654
    %1682 = vmatprep.subr.mxu0 0.0
    %1683 = vmatpush1.msra.mxu0 %v1655
    %1684 = vmatprep.subr.mxu0 0.0
    %1685 = vmatpush1.msra.mxu0 %v1656
    %1686 = vmatprep.subr.mxu0 0.0
    %1687 = vmatpush1.msra.mxu0 %v1657
    %1688 = vmatprep.subr.mxu0 0.0
    %1689 = vmatpush1.msra.mxu0 %v1658
    %1690 = vmatprep.subr.mxu0 0.0
    %1691 = vmatpush1.msra.mxu0 %v1659
    %1692 = vmatprep.subr.mxu0 0.0
    %1693 = vmatpush1.msra.mxu0 %v1660
    %1694 = vmatprep.subr.mxu0 0.0
    %1695 = vmatpush1.msra.mxu0 0.0
    %1696 = vmatprep.subr.mxu0 0.0
    %1697 = vmatpush1.msra.mxu0 0.0
    %1698 = vmatprep.subr.mxu0 0.0
    %1699 = vmatpush1.msra.mxu0 0.0
    %1700 = vmatprep.subr.mxu0 0.0
    %1701 = vmatpush1.msra.mxu0 0.0
    %1702 = vmatprep.subr.mxu0 0.0
    %1703 = vmatpush1.msra.mxu0 0.0
    %1704 = vmatprep.subr.mxu0 0.0
    %1705 = vmatpush1.msra.mxu0 0.0
    %1706 = vmatprep.subr.mxu0 0.0
    %1707 = vmatpush1.msra.mxu0 0.0
    %1708 = vmatprep.subr.mxu0 0.0
    %1709 = vmatpush1.msra.mxu0 0.0
    %1710 = vmatprep.subr.mxu0 0.0
    %1711 = vmatpush1.msra.mxu0 0.0
    %1712 = vmatprep.subr.mxu0 0.0
    %1713 = vmatpush1.msra.mxu0 0.0
    %1714 = vmatprep.subr.mxu0 0.0
    %1715 = vmatpush1.msra.mxu0 0.0
    %1716 = vmatprep.subr.mxu0 0.0
    %1717 = vmatpush1.msra.mxu0 0.0
    %1718 = vmatprep.subr.mxu0 0.0
    %1719 = vmatpush1.msra.mxu0 0.0
    %1720 = vmatprep.subr.mxu0 0.0
    %1721 = vmatpush1.msra.mxu0 0.0
    %1722 = vmatprep.subr.mxu0 0.0
    %1723 = vmatpush1.msra.mxu0 0.0
    %1724 = vmatprep.subr.mxu0 0.0
    %1725 = vmatpush1.msra.mxu0 0.0
    %1726 = vmatprep.mubr.f32.mxu0 0.0
    %1727 = vmatmul.mubr.f32.gmra.mrb[0].mxu0 %v1644
    %v1728 = vpop.f32.mrb[0].mxu0
    %v1729 = vadd.f32 %v1661, %v1728
    %v1730 = vpop.f32.mrb[0].mxu0
    %1731 = vdwg.mxu0
    %v1732 = vlaneseq
    %v1733 = vshrl.u32 %v1732, 7
    %v1734 = vsub.s32 0, %v1733
    %v1735 = vrot.slane %v1729, %v1734
    %v1736 = vmax.f32 %v471, %v1735
    %v1737 = vld [vmem:[#allocation17] sm:$0xff]
    %v1738 = vld [vmem:[#allocation17 + $0x8] sm:$0xff]
    %v1739 = vld [vmem:[#allocation17 + $0x10] sm:$0xff]
    %v1740 = vld [vmem:[#allocation17 + $0x18] sm:$0xff]
    %v1741 = vld [vmem:[#allocation17 + $0x20] sm:$0xff]
    %v1742 = vld [vmem:[#allocation17 + $0x28] sm:$0xff]
    %v1743 = vld [vmem:[#allocation17 + $0x30] sm:$0xff]
    %v1744 = vld [vmem:[#allocation17 + $0x38] sm:$0xff]
    %v1745 = vld [vmem:[#allocation17 + $0x40] sm:$0xff]
    %v1746 = vld [vmem:[#allocation17 + $0x48] sm:$0xff]
    %v1747 = vld [vmem:[#allocation17 + $0x50] sm:$0xff]
    %v1748 = vld [vmem:[#allocation17 + $0x58] sm:$0xff]
    %v1749 = vld [vmem:[#allocation17 + $0x60] sm:$0xff]
    %v1750 = vld [vmem:[#allocation17 + $0x68] sm:$0xff]
    %v1751 = vld [vmem:[#allocation17 + $0x70] sm:$0xff]
    %v1752 = vld [vmem:[#allocation17 + $0x78] sm:$0xff]
    %v1753 = vld [vmem:[%s17] sm:$0x1]
    %v1755 = vlaneseq
    %v1756 = vshrl.u32 %v1755, 7
    %v1757 = vsub.s32 0, %v1756
    %v1758 = vrot.slane %v1753, %v1757
    %1760 = vmatprep.subr.mxu0 0.0
    %1761 = vmatpush1.msra.mxu0 %v1737
    %1762 = vmatprep.subr.mxu0 0.0
    %1763 = vmatpush1.msra.mxu0 %v1738
    %1764 = vmatprep.subr.mxu0 0.0
    %1765 = vmatpush1.msra.mxu0 %v1739
    %1766 = vmatprep.subr.mxu0 0.0
    %1767 = vmatpush1.msra.mxu0 %v1740
    %1768 = vmatprep.subr.mxu0 0.0
    %1769 = vmatpush1.msra.mxu0 %v1741
    %1770 = vmatprep.subr.mxu0 0.0
    %1771 = vmatpush1.msra.mxu0 %v1742
    %1772 = vmatprep.subr.mxu0 0.0
    %1773 = vmatpush1.msra.mxu0 %v1743
    %1774 = vmatprep.subr.mxu0 0.0
    %1775 = vmatpush1.msra.mxu0 %v1744
    %1776 = vmatprep.subr.mxu0 0.0
    %1777 = vmatpush1.msra.mxu0 %v1745
    %1778 = vmatprep.subr.mxu0 0.0
    %1779 = vmatpush1.msra.mxu0 %v1746
    %1780 = vmatprep.subr.mxu0 0.0
    %1781 = vmatpush1.msra.mxu0 %v1747
    %1782 = vmatprep.subr.mxu0 0.0
    %1783 = vmatpush1.msra.mxu0 %v1748
    %1784 = vmatprep.subr.mxu0 0.0
    %1785 = vmatpush1.msra.mxu0 %v1749
    %1786 = vmatprep.subr.mxu0 0.0
    %1787 = vmatpush1.msra.mxu0 %v1750
    %1788 = vmatprep.subr.mxu0 0.0
    %1789 = vmatpush1.msra.mxu0 %v1751
    %1790 = vmatprep.subr.mxu0 0.0
    %1791 = vmatpush1.msra.mxu0 %v1752
    %1792 = vmatprep.subr.mxu0 0.0
    %1793 = vmatpush1.msra.mxu0 0.0
    %1794 = vmatprep.subr.mxu0 0.0
    %1795 = vmatpush1.msra.mxu0 0.0
    %1796 = vmatprep.subr.mxu0 0.0
    %1797 = vmatpush1.msra.mxu0 0.0
    %1798 = vmatprep.subr.mxu0 0.0
    %1799 = vmatpush1.msra.mxu0 0.0
    %1800 = vmatprep.subr.mxu0 0.0
    %1801 = vmatpush1.msra.mxu0 0.0
    %1802 = vmatprep.subr.mxu0 0.0
    %1803 = vmatpush1.msra.mxu0 0.0
    %1804 = vmatprep.subr.mxu0 0.0
    %1805 = vmatpush1.msra.mxu0 0.0
    %1806 = vmatprep.subr.mxu0 0.0
    %1807 = vmatpush1.msra.mxu0 0.0
    %1808 = vmatprep.subr.mxu0 0.0
    %1809 = vmatpush1.msra.mxu0 0.0
    %1810 = vmatprep.subr.mxu0 0.0
    %1811 = vmatpush1.msra.mxu0 0.0
    %1812 = vmatprep.subr.mxu0 0.0
    %1813 = vmatpush1.msra.mxu0 0.0
    %1814 = vmatprep.subr.mxu0 0.0
    %1815 = vmatpush1.msra.mxu0 0.0
    %1816 = vmatprep.subr.mxu0 0.0
    %1817 = vmatpush1.msra.mxu0 0.0
    %1818 = vmatprep.subr.mxu0 0.0
    %1819 = vmatpush1.msra.mxu0 0.0
    %1820 = vmatprep.subr.mxu0 0.0
    %1821 = vmatpush1.msra.mxu0 0.0
    %1822 = vmatprep.subr.mxu0 0.0
    %1823 = vmatpush1.msra.mxu0 0.0
    %1824 = vmatprep.mubr.f32.mxu0 0.0
    %1825 = vmatmul.mubr.f32.gmra.mrb[0].mxu0 %v1736
    %v1826 = vpop.f32.mrb[0].mxu0
    %v1827 = vadd.f32 %v1758, %v1826
    %v1828 = vpop.f32.mrb[0].mxu0
    %1829 = vdwg.mxu0
    %v1830 = vsel %vm1474, %v1827, -inf
    %1831 = vmax.xlane.f32.xlu0 %v1830
    %v1832 = vpop.xlane.xlu0 %1831
    %v1833 = vsub.f32 %v1827, %v1832
    %v1834 = vmul.f32 %v1833, 1.442695
    %v1835 = vpow.pop %v1834
    %v1836 = vsel %vm1474, %v1835, 0.0
    %1837 = vadd.xlane.f32.xlu0 %v1836
    %v1838 = vpop.xlane.xlu0 %1837
    %v1839 = vrcp.pop %v1838
    %v1840 = vmul.f32 %v1835, %v1839
    %1841 = vst [vmem:[#allocation19] sm:$0x3] %v1840
    // Predicated region
    $region114: #{tpu_custom_call.1} parent=1 // pred_check
      _
    $region115: #{tpu_custom_call.1} parent=1 // pred_check_branch
      %1843 = sbr.rel (0) target = $region117
    $region116: #{tpu_custom_call.1} parent=1 // pred_region
      %s1845 = ssub.s32 32, 32
      %1846 = vsyncadd [#allocation4], %s1845
      %s1848 = sshll.u32 [#allocation19], 4
      %s1849 = int_to_ptr.vmem [resolvable:$true] %s1848
      %1851 = dma.vmem_to_hbm [thread:$0]  %s1849, 32, %s18, [#allocation4]
    $region117: #{tpu_custom_call.1} parent=1 // pred_fallthru
      _
    // Predicated region
    $region118: #{tpu_custom_call.1} parent=1 // pred_check
      _
    $region119: #{tpu_custom_call.1} parent=1 // pred_check_branch
      %1853 = sbr.rel (0) target = $region121
    $region120: #{tpu_custom_call.1} parent=1 // pred_region
      %1854 = dma.done [#allocation4], 32
    $region121: #{tpu_custom_call.1} parent=1 // pred_fallthru
      _
    %1855 = vsyncpa [#allocation3], 1
    %1856 = vsyncpa [#allocation6], 1
    %1857 = vsyncpa [#allocation9], 1
    %1858 = vsyncpa [#allocation12], 1
    %1859 = vsyncpa [#allocation15], 1
    %1860 = vsyncpa [#allocation18], 1
    %1861 = vsyncpa [#allocation4], 1

</llo_original>
